<compile_context>
chip_gen: v7x
topology: tpu7x:2x2x1
jax: 0.10.0
libtpu: 0.0.40
codegen_flags: <defaults>
</compile_context>

<pallas_src>
import functools

import jax
import jax.numpy as jnp
from jax import lax
from jax.experimental import pallas as pl
from jax.experimental.pallas import tpu as pltpu

COSFACE_S = 64.0      # margin_softmax = CosFace(s=64, m=0.4)
COSFACE_M = 0.4
EPS_NORM = 1e-12      # torch F.normalize eps
NEG_BIG = -1e30       # "minus infinity" for masked (padded) class columns


def _round_up(x, m):
    return (x + m - 1) // m * m


def _dist_softmax_kernel(feat_ref, w_ref, label_ref, row_loss_ref,
                         featn_ref, m_ref, l_ref, t_ref,
                         *, num_classes, padded_classes, compute_dtype):
    """Grid = (batch tile [parallel], class tile [arbitrary reduction])."""
    c_idx = pl.program_id(1)
    labels = label_ref[...]                                    # [TB, 1] int32

    @pl.when(c_idx == 0)
    def _init():
        # Row L2-normalize the feature tile once per batch tile (rsqrt -> EUP),
        # cache it in VMEM scratch in the MXU compute dtype.
        feat = feat_ref[...].astype(jnp.float32)               # [TB, E]
        inv = lax.rsqrt(jnp.maximum(
            jnp.sum(feat * feat, axis=1, keepdims=True), EPS_NORM * EPS_NORM))
        featn_ref[...] = (feat * inv).astype(compute_dtype)
        m_ref[...] = jnp.full_like(m_ref, NEG_BIG)             # running max
        l_ref[...] = jnp.zeros_like(l_ref)                     # running sum-exp
        t_ref[...] = jnp.zeros_like(t_ref)                     # target logit

    w = w_ref[...]                                             # [TC, E]
    tile_c = w.shape[0]

    # Per-class 1/||w||, folded into the logits instead of materializing a
    # normalized [C, E] weight.  Computed as a 1-row MXU matvec so the result
    # lands lane-major as (1, TC) with no relayout.  The CosFace scale s is
    # folded into the same per-column multiplier.
    ones_row = jnp.ones((1, w.shape[1]), dtype=w.dtype)
    w_sumsq = lax.dot_general(ones_row, w * w,
                              dimension_numbers=(((1,), (1,)), ((), ())),
                              preferred_element_type=jnp.float32)   # [1, TC]
    col_scale = lax.rsqrt(jnp.maximum(w_sumsq, EPS_NORM * EPS_NORM)) * COSFACE_S

    # Cosine logits: 'nt' contraction (both operands contract their last/lane
    # dim -> no XLU transpose), f32 accumulation on the MXU.
    logits = lax.dot_general(featn_ref[...], w,
                             dimension_numbers=(((1,), (1,)), ((), ())),
                             preferred_element_type=jnp.float32)    # [TB, TC]
    logits = logits * col_scale                                     # s * cos

    tb = logits.shape[0]
    col = c_idx * tile_c + lax.broadcasted_iota(jnp.int32, (tb, tile_c), 1)
    one_hot = (col == labels) & (labels >= 0)

    # CosFace: s*(cos - m) at the target column (margin pre-scaled by s).
    logits = jnp.where(one_hot, logits - COSFACE_M * COSFACE_S, logits)
    if padded_classes != num_classes:
        # Mask padded class columns so they never reach max / sum-exp.
        logits = jnp.where(col < num_classes, logits, NEG_BIG)

    # Target logit accumulator (the target class lives in exactly one tile).
    t_ref[...] += jnp.sum(jnp.where(one_hot, logits, 0.0), axis=1, keepdims=True)

    # Online (flash-style) softmax denominator across class tiles.
    m_prev = m_ref[...]
    m_new = jnp.maximum(m_prev, jnp.max(logits, axis=1, keepdims=True))
    l_ref[...] = (jnp.exp(m_prev - m_new) * l_ref[...]
                  + jnp.sum(jnp.exp(logits - m_new), axis=1, keepdims=True))
    m_ref[...] = m_new

    @pl.when(c_idx == pl.num_programs(1) - 1)
    def _finalize():
        # Cross-entropy via log-sum-exp: exact even when the target probability
        # underflows (replaces the probs divide + 1e-30 clamp of the module).
        lse = m_ref[...] + jnp.log(l_ref[...])                 # [TB, 1]
        row_loss_ref[...] = jnp.where(labels >= 0, lse - t_ref[...], 0.0)


def dist_softmax_loss(features, weight, total_label, *,
                      tile_b=128, tile_c=2048, compute_dtype=jnp.bfloat16):
    """DistSoftmax forward loss for a single rank (world_size == 1).

    features: [B, E] f32, weight: [C, E] f32, total_label: [B] int (-1 = skip).
    """
    batch, emb = features.shape
    num_classes, emb_w = weight.shape
    assert emb == emb_w

    # Pad the batch to a full (>=128-row) LHS tile so the MXU systolic array is
    # actually fed; padded rows get label -1 and contribute 0 to the loss.
    tile_b = max(8, int(tile_b))
    b_pad = _round_up(max(batch, tile_b), tile_b)
    # Class tile: largest that keeps double-buffered weight tiles + the
    # [TB, TC] logits comfortably inside scoped VMEM on v5e/v6e/v7x.
    tile_c = max(128, min(int(tile_c), _round_up(num_classes, 128)))
    c_pad = _round_up(num_classes, tile_c)

    feat = features.astype(jnp.float32)
    labels = total_label.astype(jnp.int32)
    if b_pad != batch:
        feat = jnp.pad(feat, ((0, b_pad - batch), (0, 0)))
        labels = jnp.pad(labels, (0, b_pad - batch), constant_values=-1)
    labels2d = labels.reshape(b_pad, 1)

    # Ship class centers in the compute dtype (bf16 default): halves the
    # HBM->VMEM weight DMA and runs the MXU at its bf16 rate.
    w = weight.astype(compute_dtype)
    if c_pad != num_classes:
        w = jnp.pad(w, ((0, c_pad - num_classes), (0, 0)))

    grid = (b_pad // tile_b, c_pad // tile_c)

    itemsize = jnp.dtype(compute_dtype).itemsize
    est = (2 * tile_c * emb * itemsize        # double-buffered weight tiles
           + 2 * tile_b * emb * 4             # double-buffered feature tiles
           + tile_b * emb * itemsize          # normalized-feature scratch
           + tile_c * emb * itemsize          # w*w temporary
           + 6 * tile_b * tile_c * 4          # logits / exp / select temporaries
           + 16 * tile_b * 4)                 # m/l/t scratch, labels, output
    vmem_limit = int(min(48 * 1024 * 1024, max(32 * 1024 * 1024, 2 * est)))

    kernel = functools.partial(_dist_softmax_kernel,
                               num_classes=num_classes,
                               padded_classes=c_pad,
                               compute_dtype=compute_dtype)

    row_loss = pl.pallas_call(
        kernel,
        out_shape=jax.ShapeDtypeStruct((b_pad, 1), jnp.float32),
        grid_spec=pltpu.PrefetchScalarGridSpec(
            num_scalar_prefetch=0,
            grid=grid,
            in_specs=[
                pl.BlockSpec((tile_b, emb), lambda b, c: (b, 0)),   # features
                pl.BlockSpec((tile_c, emb), lambda b, c: (c, 0)),   # weight
                pl.BlockSpec((tile_b, 1), lambda b, c: (b, 0)),     # labels
            ],
            out_specs=pl.BlockSpec((tile_b, 1), lambda b, c: (b, 0)),
            scratch_shapes=[
                pltpu.VMEM((tile_b, emb), compute_dtype),   # normalized features
                pltpu.VMEM((tile_b, 1), jnp.float32),       # running max
                pltpu.VMEM((tile_b, 1), jnp.float32),       # running sum-exp
                pltpu.VMEM((tile_b, 1), jnp.float32),       # target logit
            ],
        ),
        compiler_params=pltpu.CompilerParams(
            dimension_semantics=("parallel", "arbitrary"),
            vmem_limit_bytes=vmem_limit,
        ),
    )(feat, w, labels2d)

    # SoftmaxFunc_: summed NLL over the gathered batch / gathered batch size
    # (world_size == 1 here, so the gathered batch is the local batch).
    return jnp.sum(row_loss) / batch


def _reference_loss(features, weight, total_label):
    """Pure-JAX f32 reference mirroring the PyTorch module (world_size=1)."""
    feat_n = features / jnp.maximum(
        jnp.linalg.norm(features, axis=1, keepdims=True), EPS_NORM)
    w_n = weight / jnp.maximum(
        jnp.linalg.norm(weight, axis=1, keepdims=True), EPS_NORM)
    logits = jnp.einsum("be,ce->bc", feat_n, w_n,
                        precision=lax.Precision.HIGHEST)
    batch, num_classes = logits.shape
    one_hot = (jnp.arange(num_classes)[None, :] == total_label[:, None]) & (
        total_label[:, None] != -1)
    logits = jnp.where(one_hot, logits - COSFACE_M, logits) * COSFACE_S
    probs = jax.nn.softmax(logits, axis=1)
    tgt = jnp.sum(jnp.where(one_hot, probs, 0.0), axis=1)
    row_loss = jnp.where(total_label != -1,
                         -jnp.log(jnp.maximum(tgt, 1e-30)), 0.0)
    return jnp.sum(row_loss) / batch


if __name__ == "__main__":
    # Single-rank configuration (distributed collectives become no-ops).
    rank, world_size = 0, 1
    batch_size = 8
    embedding_size = 128
    num_classes = 1000
    num_local = num_classes // world_size + int(rank < num_classes % world_size)
    class_start = (num_classes // world_size * rank
                   + min(rank, num_classes % world_size))

    key = jax.random.PRNGKey(0)
    kf, kw, kl = jax.random.split(key, 3)
    features = jax.random.normal(
        kf, (batch_size * world_size, embedding_size), jnp.float32)
    weight = 0.01 * jax.random.normal(
        kw, (num_local, embedding_size), jnp.float32)
    label = jax.random.randint(
        kl, (batch_size * world_size,), 0, num_classes, jnp.int32)

    # DistSoftmax.sample(): labels on this rank are shifted by class_start,
    # everything else becomes -1 (all in-range when world_size == 1).
    in_range = (label >= class_start) & (label < class_start + num_local)
    total_label = jnp.where(in_range, label - class_start, -1).astype(jnp.int32)
    # Simulate one sample whose class center lives on another rank.
    total_label = total_label.at[3].set(-1)

    ref = _reference_loss(features, weight, total_label)

    # f32 MXU path (exact module semantics).  tile_c=256 forces several class
    # tiles (and a partially padded last tile) to exercise the online softmax.
    loss_f32 = dist_softmax_loss(features, weight, total_label,
                                 tile_b=128, tile_c=256,
                                 compute_dtype=jnp.float32)
    jax.block_until_ready(loss_f32)
    if not jnp.allclose(loss_f32, ref, rtol=1e-2, atol=2e-2):
        raise AssertionError(f"f32 mismatch: pallas={loss_f32} ref={ref}")

    # Default bf16 MXU path (half the weight DMA bytes, bf16 MXU rate).
    loss_bf16 = dist_softmax_loss(features, weight, total_label,
                                  tile_b=128, tile_c=256,
                                  compute_dtype=jnp.bfloat16)
    jax.block_until_ready(loss_bf16)
    if not jnp.allclose(loss_bf16, ref, rtol=3e-2, atol=3e-2):
        raise AssertionError(f"bf16 mismatch: pallas={loss_bf16} ref={ref}")

    print("KERNEL_OK")
</pallas_src>

<mosaic_0001>
module attributes {stable_mosaic.version = 11 : i64} {
  func.func @_dist_softmax_kernel(%arg0: i32, %arg1: i32, %arg2: memref<128x128xf32, #tpu.memory_space<vmem>>, %arg3: memref<256x128xf32, #tpu.memory_space<vmem>>, %arg4: memref<128x1xi32, #tpu.memory_space<vmem>>, %arg5: memref<128x1xf32, #tpu.memory_space<vmem>>, %arg6: memref<128x128xf32, #tpu.memory_space<vmem>>, %arg7: memref<128x1xf32, #tpu.memory_space<vmem>>, %arg8: memref<128x1xf32, #tpu.memory_space<vmem>>, %arg9: memref<128x1xf32, #tpu.memory_space<vmem>>) attributes {dimension_semantics = [#tpu.dimension_semantics<parallel>, #tpu.dimension_semantics<arbitrary>], iteration_bounds = array<i64: 1, 4>, scalar_prefetch = 0 : i64, scratch_operands = 4 : i64, tpu.core_type = #tpu.core_type<tc>, window_params = [{transform_indices = @transform_0, window_bounds = array<i64: 128, 128>}, {transform_indices = @transform_1, window_bounds = array<i64: 256, 128>}, {transform_indices = @transform_2, window_bounds = array<i64: 128, 1>}, {transform_indices = @transform_3, window_bounds = array<i64: 128, 1>}]} {
    %c0 = arith.constant 0 : index
    %c0_0 = arith.constant 0 : index
    %0 = vector.load %arg4[%c0, %c0_0] : memref<128x1xi32, #tpu.memory_space<vmem>>, vector<128x1xi32>
    %c0_i32 = arith.constant 0 : i32
    %1 = arith.cmpi eq, %arg1, %c0_i32 : i32
    %2 = arith.extui %1 : i1 to i32
    %c0_i32_1 = arith.constant 0 : i32
    %3 = arith.cmpi ne, %2, %c0_i32_1 : i32
    scf.if %3 {
      %c0_30 = arith.constant 0 : index
      %c0_31 = arith.constant 0 : index
      %60 = vector.load %arg2[%c0_30, %c0_31] : memref<128x128xf32, #tpu.memory_space<vmem>>, vector<128x128xf32>
      %61 = arith.mulf %60, %60 : vector<128x128xf32>
      %cst_32 = arith.constant dense<0.000000e+00> : vector<128xf32>
      %62 = vector.multi_reduction <add>, %61, %cst_32 [1] : vector<128x128xf32> to vector<128xf32>
      %63 = vector.shape_cast %62 : vector<128xf32> to vector<128x1xf32>
      %cst_33 = arith.constant 1.000000e-24 : f32
      %64 = vector.broadcast %cst_33 : f32 to vector<128x1xf32>
      %65 = arith.maximumf %63, %64 : vector<128x1xf32>
      %66 = math.rsqrt %65 : vector<128x1xf32>
      %67 = vector.broadcast %66 : vector<128x1xf32> to vector<128x128xf32>
      %68 = arith.mulf %60, %67 : vector<128x128xf32>
      %c0_34 = arith.constant 0 : index
      %c0_35 = arith.constant 0 : index
      %69 = vector.load %arg6[%c0_34, %c0_35] : memref<128x128xf32, #tpu.memory_space<vmem>>, vector<128x128xf32>
      tpu.vector_store %arg6[%c0_34, %c0_35], %68 {strides = array<i32>} : memref<128x128xf32, #tpu.memory_space<vmem>>, vector<128x128xf32>,
      %cst_36 = arith.constant -1.000000e+30 : f32
      %70 = vector.broadcast %cst_36 : f32 to vector<128x1xf32>
      %c0_37 = arith.constant 0 : index
      %c0_38 = arith.constant 0 : index
      %71 = vector.load %arg7[%c0_37, %c0_38] : memref<128x1xf32, #tpu.memory_space<vmem>>, vector<128x1xf32>
      tpu.vector_store %arg7[%c0_37, %c0_38], %70 {strides = array<i32>} : memref<128x1xf32, #tpu.memory_space<vmem>>, vector<128x1xf32>,
      %cst_39 = arith.constant 0.000000e+00 : f32
      %72 = vector.broadcast %cst_39 : f32 to vector<128x1xf32>
      %c0_40 = arith.constant 0 : index
      %c0_41 = arith.constant 0 : index
      %73 = vector.load %arg8[%c0_40, %c0_41] : memref<128x1xf32, #tpu.memory_space<vmem>>, vector<128x1xf32>
      tpu.vector_store %arg8[%c0_40, %c0_41], %72 {strides = array<i32>} : memref<128x1xf32, #tpu.memory_space<vmem>>, vector<128x1xf32>,
      %cst_42 = arith.constant 0.000000e+00 : f32
      %74 = vector.broadcast %cst_42 : f32 to vector<128x1xf32>
      %c0_43 = arith.constant 0 : index
      %c0_44 = arith.constant 0 : index
      %75 = vector.load %arg9[%c0_43, %c0_44] : memref<128x1xf32, #tpu.memory_space<vmem>>, vector<128x1xf32>
      tpu.vector_store %arg9[%c0_43, %c0_44], %74 {strides = array<i32>} : memref<128x1xf32, #tpu.memory_space<vmem>>, vector<128x1xf32>,
    } else {
    }
    %c0_2 = arith.constant 0 : index
    %c0_3 = arith.constant 0 : index
    %4 = vector.load %arg3[%c0_2, %c0_3] : memref<256x128xf32, #tpu.memory_space<vmem>>, vector<256x128xf32>
    %cst = arith.constant 1.000000e+00 : f32
    %5 = vector.broadcast %cst : f32 to vector<1x128xf32>
    %6 = arith.mulf %4, %4 : vector<256x128xf32>
    %cst_4 = arith.constant dense<0.000000e+00> : vector<1x256xf32>
    %7 = tpu.matmul %5, %6, %cst_4 {dimension_numbers = #tpu.dot_dimension_numbers<[1], [1], [0], [0], [0, 0, 1, 0], [], []>} : vector<1x128xf32>, vector<256x128xf32>, vector<1x256xf32> -> vector<1x256xf32>
    %cst_5 = arith.constant 1.000000e-24 : f32
    %8 = vector.broadcast %cst_5 : f32 to vector<1x256xf32>
    %9 = arith.maximumf %7, %8 : vector<1x256xf32>
    %10 = math.rsqrt %9 : vector<1x256xf32>
    %cst_6 = arith.constant 6.400000e+01 : f32
    %11 = vector.broadcast %cst_6 : f32 to vector<1x256xf32>
    %12 = arith.mulf %10, %11 : vector<1x256xf32>
    %c0_7 = arith.constant 0 : index
    %c0_8 = arith.constant 0 : index
    %13 = vector.load %arg6[%c0_7, %c0_8] : memref<128x128xf32, #tpu.memory_space<vmem>>, vector<128x128xf32>
    %cst_9 = arith.constant dense<0.000000e+00> : vector<128x256xf32>
    %14 = tpu.matmul %13, %4, %cst_9 {dimension_numbers = #tpu.dot_dimension_numbers<[1], [1], [0], [0], [0, 0, 1, 0], [], []>} : vector<128x128xf32>, vector<256x128xf32>, vector<128x256xf32> -> vector<128x256xf32>
    %15 = vector.broadcast %12 : vector<1x256xf32> to vector<128x256xf32>
    %16 = arith.mulf %14, %15 : vector<128x256xf32>
    %c256_i32 = arith.constant 256 : i32
    %17 = arith.muli %arg1, %c256_i32 : i32
    %18 = tpu.iota {dimensions = array<i32: 1>} : vector<128x256xi32>
    %19 = vector.broadcast %17 : i32 to vector<128x256xi32>
    %20 = arith.addi %19, %18 : vector<128x256xi32>
    %21 = vector.broadcast %0 : vector<128x1xi32> to vector<128x256xi32>
    %22 = arith.cmpi eq, %20, %21 : vector<128x256xi32>
    %c0_i32_10 = arith.constant 0 : i32
    %23 = vector.broadcast %c0_i32_10 : i32 to vector<128x1xi32>
    %24 = arith.cmpi sge, %0, %23 : vector<128x1xi32>
    %25 = vector.broadcast %24 : vector<128x1xi1> to vector<128x256xi1>
    %26 = arith.andi %22, %25 : vector<128x256xi1>
    %cst_11 = arith.constant 2.560000e+01 : f32
    %27 = vector.broadcast %cst_11 : f32 to vector<128x256xf32>
    %28 = arith.subf %16, %27 : vector<128x256xf32>
    %29 = arith.select %26, %28, %16 : vector<128x256xi1>, vector<128x256xf32>
    %c1000_i32 = arith.constant 1000 : i32
    %30 = vector.broadcast %c1000_i32 : i32 to vector<128x256xi32>
    %31 = arith.cmpi slt, %20, %30 : vector<128x256xi32>
    %cst_12 = arith.constant -1.000000e+30 : f32
    %32 = vector.broadcast %cst_12 : f32 to vector<128x256xf32>
    %33 = arith.select %31, %29, %32 : vector<128x256xi1>, vector<128x256xf32>
    %c0_13 = arith.constant 0 : index
    %c0_14 = arith.constant 0 : index
    %34 = vector.load %arg9[%c0_13, %c0_14] : memref<128x1xf32, #tpu.memory_space<vmem>>, vector<128x1xf32>
    %cst_15 = arith.constant 0.000000e+00 : f32
    %35 = vector.broadcast %cst_15 : f32 to vector<128x256xf32>
    %36 = arith.select %26, %33, %35 : vector<128x256xi1>, vector<128x256xf32>
    %cst_16 = arith.constant dense<0.000000e+00> : vector<128xf32>
    %37 = vector.multi_reduction <add>, %36, %cst_16 [1] : vector<128x256xf32> to vector<128xf32>
    %38 = vector.shape_cast %37 : vector<128xf32> to vector<128x1xf32>
    %39 = arith.addf %34, %38 : vector<128x1xf32>
    %c0_17 = arith.constant 0 : index
    %c0_18 = arith.constant 0 : index
    %40 = vector.load %arg9[%c0_17, %c0_18] : memref<128x1xf32, #tpu.memory_space<vmem>>, vector<128x1xf32>
    tpu.vector_store %arg9[%c0_17, %c0_18], %39 {strides = array<i32>} : memref<128x1xf32, #tpu.memory_space<vmem>>, vector<128x1xf32>,
    %c0_19 = arith.constant 0 : index
    %c0_20 = arith.constant 0 : index
    %41 = vector.load %arg7[%c0_19, %c0_20] : memref<128x1xf32, #tpu.memory_space<vmem>>, vector<128x1xf32>
    %cst_21 = arith.constant dense<0xFF800000> : vector<128xf32>
    %42 = vector.multi_reduction <maximumf>, %33, %cst_21 [1] : vector<128x256xf32> to vector<128xf32>
    %43 = vector.shape_cast %42 : vector<128xf32> to vector<128x1xf32>
    %44 = arith.maximumf %41, %43 : vector<128x1xf32>
    %45 = arith.subf %41, %44 : vector<128x1xf32>
    %46 = math.exp %45 : vector<128x1xf32>
    %c0_22 = arith.constant 0 : index
    %c0_23 = arith.constant 0 : index
    %47 = vector.load %arg8[%c0_22, %c0_23] : memref<128x1xf32, #tpu.memory_space<vmem>>, vector<128x1xf32>
    %48 = arith.mulf %46, %47 : vector<128x1xf32>
    %49 = vector.broadcast %44 : vector<128x1xf32> to vector<128x256xf32>
    %50 = arith.subf %33, %49 : vector<128x256xf32>
    %51 = math.exp %50 : vector<128x256xf32>
    %cst_24 = arith.constant dense<0.000000e+00> : vector<128xf32>
    %52 = vector.multi_reduction <add>, %51, %cst_24 [1] : vector<128x256xf32> to vector<128xf32>
    %53 = vector.shape_cast %52 : vector<128xf32> to vector<128x1xf32>
    %54 = arith.addf %48, %53 : vector<128x1xf32>
    %c0_25 = arith.constant 0 : index
    %c0_26 = arith.constant 0 : index
    %55 = vector.load %arg8[%c0_25, %c0_26] : memref<128x1xf32, #tpu.memory_space<vmem>>, vector<128x1xf32>
    tpu.vector_store %arg8[%c0_25, %c0_26], %54 {strides = array<i32>} : memref<128x1xf32, #tpu.memory_space<vmem>>, vector<128x1xf32>,
    %c0_27 = arith.constant 0 : index
    %c0_28 = arith.constant 0 : index
    %56 = vector.load %arg7[%c0_27, %c0_28] : memref<128x1xf32, #tpu.memory_space<vmem>>, vector<128x1xf32>
    tpu.vector_store %arg7[%c0_27, %c0_28], %44 {strides = array<i32>} : memref<128x1xf32, #tpu.memory_space<vmem>>, vector<128x1xf32>,
    %c3_i32 = arith.constant 3 : i32
    %57 = arith.cmpi eq, %arg1, %c3_i32 : i32
    %58 = arith.extui %57 : i1 to i32
    %c0_i32_29 = arith.constant 0 : i32
    %59 = arith.cmpi ne, %58, %c0_i32_29 : i32
    scf.if %59 {
      %c0_30 = arith.constant 0 : index
      %c0_31 = arith.constant 0 : index
      %60 = vector.load %arg7[%c0_30, %c0_31] : memref<128x1xf32, #tpu.memory_space<vmem>>, vector<128x1xf32>
      %c0_32 = arith.constant 0 : index
      %c0_33 = arith.constant 0 : index
      %61 = vector.load %arg8[%c0_32, %c0_33] : memref<128x1xf32, #tpu.memory_space<vmem>>, vector<128x1xf32>
      %62 = math.log %61 : vector<128x1xf32>
      %63 = arith.addf %60, %62 : vector<128x1xf32>
      %c0_i32_34 = arith.constant 0 : i32
      %64 = vector.broadcast %c0_i32_34 : i32 to vector<128x1xi32>
      %65 = arith.cmpi sge, %0, %64 : vector<128x1xi32>
      %c0_35 = arith.constant 0 : index
      %c0_36 = arith.constant 0 : index
      %66 = vector.load %arg9[%c0_35, %c0_36] : memref<128x1xf32, #tpu.memory_space<vmem>>, vector<128x1xf32>
      %67 = arith.subf %63, %66 : vector<128x1xf32>
      %cst_37 = arith.constant 0.000000e+00 : f32
      %68 = vector.broadcast %cst_37 : f32 to vector<128x1xf32>
      %69 = arith.select %65, %67, %68 : vector<128x1xi1>, vector<128x1xf32>
      %c0_38 = arith.constant 0 : index
      %c0_39 = arith.constant 0 : index
      %70 = vector.load %arg5[%c0_38, %c0_39] : memref<128x1xf32, #tpu.memory_space<vmem>>, vector<128x1xf32>
      tpu.vector_store %arg5[%c0_38, %c0_39], %69 {strides = array<i32>} : memref<128x1xf32, #tpu.memory_space<vmem>>, vector<128x1xf32>,
    } else {
    }
    return
  }
  func.func @transform_0(%arg0: i32, %arg1: i32) -> (i32, i32) {
    %c0_i32 = arith.constant 0 : i32
    %c0_i32_0 = arith.constant 0 : i32
    return %arg0, %c0_i32 : i32, i32
  }
  func.func @transform_1(%arg0: i32, %arg1: i32) -> (i32, i32) {
    %c0_i32 = arith.constant 0 : i32
    %c0_i32_0 = arith.constant 0 : i32
    return %arg1, %c0_i32 : i32, i32
  }
  func.func @transform_2(%arg0: i32, %arg1: i32) -> (i32, i32) {
    %c0_i32 = arith.constant 0 : i32
    %c0_i32_0 = arith.constant 0 : i32
    return %arg0, %c0_i32 : i32, i32
  }
  func.func @transform_3(%arg0: i32, %arg1: i32) -> (i32, i32) {
    %c0_i32 = arith.constant 0 : i32
    %c0_i32_0 = arith.constant 0 : i32
    return %arg0, %c0_i32 : i32, i32
  }
}

</mosaic_0001>

<llo_original>
// kernel: tpu_custom_call.1
$region0: #{tpu_custom_call.1}
  #allocation0 [shape = 'u32[]', space=smem, size = 0x4, offset = 0x4, fixed_abs, tag = 'smem constant byte address 0x4 - core index']
  #allocation1 [shape = 'u32[144,128]{1,0:T(1,128)}', space=vmem, size = 0x12000, scoped, tag = 'internal scratch']
  #allocation2 [shape = 'f32[128,128]{1,0:T(8,128)}', space=vmem, size = 0x10000, scoped, tag = 'scratch operand']
  #allocation3 [shape = 'f32[128,1]{1,0:T(8,128)}', space=vmem, size = 0x10000, scoped, tag = 'scratch operand']
  #allocation4 [shape = 'f32[128,1]{1,0:T(8,128)}', space=vmem, size = 0x10000, scoped, tag = 'scratch operand']
  #allocation5 [shape = 'f32[128,1]{1,0:T(8,128)}', space=vmem, size = 0x10000, scoped, tag = 'scratch operand']
  %s0 = inlined_call_operand.vmem [shape: f32[128,128], index: 0, kind: input, shape index: {}]
  %s1 = inlined_call_operand.hbm [shape: f32[1024,128], index: 1, kind: input, shape index: {}]
  %s2 = inlined_call_operand.vmem [shape: s32[128,1], index: 2, kind: input, shape index: {}]
  %s3 = inlined_call_operand.vmem [shape: f32[128,1], index: 3, kind: output, shape index: {}]
  %s4 = sld [smem:[#allocation0]]
  $region57: #{tpu_custom_call.1} parent=0
    _
  %s6 = ssub.s32 1, %s4
  %s7 = scalar_select 0, %s6, %s4
  $region1: #{tpu_custom_call.1} parent=0
    #allocation6 [shape = 'u8[262144]{0}', space=vmem, size = 0x40000, scoped, tag = 'input window, operand 1']
    #allocation7 [shape = 's32[2]{0}', space=sflag, size = 0x8, scoped, tag = 'scoped memory for tpu_custom_call.1']
    %8 = vsyncpa [#allocation7], 0
    %s9 = scalar_lea.sflag [#allocation7], 1
    %10 = vsyncpa %s9, 0
    loop: start=0, step=1, limit=6
    $region2: #{tpu_custom_call.1} parent=1 // loop_pre_header
      _
    $region3: #{tpu_custom_call.1} parent=1 // loop_header
      %s12 = sphi 0, %s16
      %p13 = scmp.ge.s32.totalorder %s12, 6
      %s19 = sphi 0, %s31
      %s20 = sphi 0, %s27
      %s21 = sphi 0, %s19
      %s22 = sphi 0, %s20
      %s23 = sphi 0, %s21
      %s24 = sphi 0, %s22
      %s34 = sphi 0, %s36
      %s37 = sphi 0, %s34
      %s38 = sphi 0, %s37
      %s54 = sphi 0, %s38
      %s60 = sphi 0, %s62
      %s63 = sphi 0, %s60
      %s64 = sphi 0, %s63
      %s80 = sphi 0, %s64
      %s86 = sphi 0, %s88
      %s89 = sphi 0, %s86
      %s90 = sphi 0, %s89
      %s106 = sphi 0, %s90
      %s112 = sphi 0, %s114
      %s115 = sphi 0, %s112
      %s116 = sphi 0, %s115
      %s132 = sphi 0, %s116
    $region4: #{tpu_custom_call.1} parent=1 // loop_header_branch
      %15 = sbr.rel (%p13) target = $region8
    $region5: #{tpu_custom_call.1} parent=1 // loop_body
      %s17 = ssub.s32 %s12, 1
      %s18 = ssub.s32 %s12, 2
      %s25 = sadd.s32 1, %s20
      %p26 = scmp.ge.s32.totalorder %s25, 4
      %s27 = scalar_select %p26, 0, %s25
      %s28 = sadd.s32 1, %s19
      %s29 = scalar_select %p26, %s28, %s19
      %p30 = scmp.ge.s32.totalorder %s29, 1
      %s31 = scalar_select %p30, 0, %s29
      %s32 = ssub.s32 %s19, %s31
      %p33 = scmp.eq.s32.totalorder %s32, 0
      %s35 = sadd.s32 %s34, 1
      %s36 = scalar_select %p33, %s34, %s35
      %p39 = pneg %p33
      %p40 = scmp.eq.s32.totalorder %s12, 3
      %p41 = por %p39, %p40
      %p42 = scmp.ne.s32.totalorder %s34, %s37
      %p43 = scmp.eq.s32.totalorder %s12, 0
      %p44 = por %p42, %p43
      %p45 = scmp.ne.s32.totalorder %s34, %s37
      %p46 = scmp.eq.s32.totalorder %s17, 3
      %p47 = por %p45, %p46
      %p48 = scmp.ne.s32.totalorder %s37, %s38
      %p49 = scmp.eq.s32.totalorder %s17, 0
      %p50 = por %p48, %p49
      %p51 = scmp.ne.s32.totalorder %s37, %s38
      %p52 = scmp.eq.s32.totalorder %s18, 3
      %p53 = por %p51, %p52
      %p55 = scmp.ne.s32.totalorder %s38, %s54
      %p56 = scmp.eq.s32.totalorder %s18, 0
      %p57 = por %p55, %p56
      %s58 = ssub.s32 %s20, %s27
      %p59 = scmp.eq.s32.totalorder %s58, 0
      %s61 = sadd.s32 %s60, 1
      %s62 = scalar_select %p59, %s60, %s61
      %p65 = pneg %p59
      %p66 = scmp.eq.s32.totalorder %s12, 3
      %p67 = por %p65, %p66
      %p68 = scmp.ne.s32.totalorder %s60, %s63
      %p69 = scmp.eq.s32.totalorder %s12, 0
      %p70 = por %p68, %p69
      %p71 = scmp.ne.s32.totalorder %s60, %s63
      %p72 = scmp.eq.s32.totalorder %s17, 3
      %p73 = por %p71, %p72
      %p74 = scmp.ne.s32.totalorder %s63, %s64
      %p75 = scmp.eq.s32.totalorder %s17, 0
      %p76 = por %p74, %p75
      %p77 = scmp.ne.s32.totalorder %s63, %s64
      %p78 = scmp.eq.s32.totalorder %s18, 3
      %p79 = por %p77, %p78
      %p81 = scmp.ne.s32.totalorder %s64, %s80
      %p82 = scmp.eq.s32.totalorder %s18, 0
      %p83 = por %p81, %p82
      %s84 = ssub.s32 %s19, %s31
      %p85 = scmp.eq.s32.totalorder %s84, 0
      %s87 = sadd.s32 %s86, 1
      %s88 = scalar_select %p85, %s86, %s87
      %p91 = pneg %p85
      %p92 = scmp.eq.s32.totalorder %s12, 3
      %p93 = por %p91, %p92
      %p94 = scmp.ne.s32.totalorder %s86, %s89
      %p95 = scmp.eq.s32.totalorder %s12, 0
      %p96 = por %p94, %p95
      %p97 = scmp.ne.s32.totalorder %s86, %s89
      %p98 = scmp.eq.s32.totalorder %s17, 3
      %p99 = por %p97, %p98
      %p100 = scmp.ne.s32.totalorder %s89, %s90
      %p101 = scmp.eq.s32.totalorder %s17, 0
      %p102 = por %p100, %p101
      %p103 = scmp.ne.s32.totalorder %s89, %s90
      %p104 = scmp.eq.s32.totalorder %s18, 3
      %p105 = por %p103, %p104
      %p107 = scmp.ne.s32.totalorder %s90, %s106
      %p108 = scmp.eq.s32.totalorder %s18, 0
      %p109 = por %p107, %p108
      %s110 = ssub.s32 %s19, %s31
      %p111 = scmp.eq.s32.totalorder %s110, 0
      %s113 = sadd.s32 %s112, 1
      %s114 = scalar_select %p111, %s112, %s113
      %p117 = pneg %p111
      %p118 = scmp.eq.s32.totalorder %s12, 3
      %p119 = por %p117, %p118
      %p120 = scmp.ne.s32.totalorder %s112, %s115
      %p121 = scmp.eq.s32.totalorder %s12, 0
      %p122 = por %p120, %p121
      %p123 = scmp.ne.s32.totalorder %s112, %s115
      %p124 = scmp.eq.s32.totalorder %s17, 3
      %p125 = por %p123, %p124
      %p126 = scmp.ne.s32.totalorder %s115, %s116
      %p127 = scmp.eq.s32.totalorder %s17, 0
      %p128 = por %p126, %p127
      %p129 = scmp.ne.s32.totalorder %s115, %s116
      %p130 = scmp.eq.s32.totalorder %s18, 3
      %p131 = por %p129, %p130
      %p133 = scmp.ne.s32.totalorder %s116, %s132
      %p134 = scmp.eq.s32.totalorder %s18, 0
      %p135 = por %p133, %p134
      %p136 = scmp.le.s32.totalorder 1, %s12
      %p137 = scmp.lt.s32.totalorder %s12, 5
      %p138 = pnand %p136, %p137
      %p139 = pneg %p138
      // Predicated region
      $region9: #{tpu_custom_call.1} parent=5 // pred_check
        _
      $region10: #{tpu_custom_call.1} parent=5 // pred_check_branch
        %141 = sbr.rel (%p138) target = $region12
      $region11: #{tpu_custom_call.1} parent=5 // pred_region
        %s142 = ssub.s32 %s12, 1
        // Predicated region
        $region13: #{tpu_custom_call.1} parent=11 // pred_check
          %p143 = pneg %p50
        $region14: #{tpu_custom_call.1} parent=11 // pred_check_branch
          %145 = sbr.rel (%p143) target = $region16
        $region15: #{tpu_custom_call.1} parent=11 // pred_region
          %s146 = smul.u32 16, %s21
          %p147 = scmp.lt.s32.totalorder %s146, 15
          %s148 = scalar_select %p147, %s146, 15
          %s149 = smul.addr %s148, 8
          %s150 = scalar_lea.vmem %s0, %s149
          %s151 = smul.u32 16, %s21
        $region16: #{tpu_custom_call.1} parent=11 // pred_fallthru
          _
        // Predicated region
        $region17: #{tpu_custom_call.1} parent=11 // pred_check
          %p152 = pneg %p102
        $region18: #{tpu_custom_call.1} parent=11 // pred_check_branch
          %154 = sbr.rel (%p152) target = $region20
        $region19: #{tpu_custom_call.1} parent=11 // pred_region
          %s155 = smul.u32 16, %s21
          %p156 = scmp.lt.s32.totalorder %s155, 15
          %s157 = scalar_select %p156, %s155, 15
          %s158 = smul.addr %s157, 8
          %s159 = scalar_lea.vmem %s2, %s158
          %s160 = smul.u32 16, %s21
        $region20: #{tpu_custom_call.1} parent=11 // pred_fallthru
          _
      $region12: #{tpu_custom_call.1} parent=5 // pred_fallthru
        _
      %p161 = scmp.lt.s32.totalorder %s12, 4
      // Predicated region
      $region21: #{tpu_custom_call.1} parent=5 // pred_check
        %p162 = pneg %p161
      $region22: #{tpu_custom_call.1} parent=5 // pred_check_branch
        %164 = sbr.rel (%p162) target = $region24
      $region23: #{tpu_custom_call.1} parent=5 // pred_region
        // Predicated region
        $region25: #{tpu_custom_call.1} parent=23 // pred_check
          %p165 = pneg %p70
        $region26: #{tpu_custom_call.1} parent=23 // pred_check_branch
          %167 = sbr.rel (%p165) target = $region28
        $region27: #{tpu_custom_call.1} parent=23 // pred_region
          %s168 = sand.u32 %s60, 1
          %s169 = scalar_lea.sflag [#allocation7], %s168
          %s170 = sand.u32 %s60, 1
          %s171 = smul.addr %s170, 256
          %s172 = scalar_lea.vmem [#allocation6], %s171
          %s173 = smul.u32 32, %s20
          %s175 = ssub.s32 4096, 4096
          %176 = vsyncadd %s169, %s175
          %s177 = smul.addr %s173, 128
          %s178 = scalar_lea.hbm %s1, %s177
          %s179 = sshll.u32 %s172, 4
          %s180 = int_to_ptr.vmem [resolvable:$true] %s179
          %185 = dma.hbm_to_vmem [thread:$0]  %s178, 4096, %s180, %s169, 128, 128, 8
        $region28: #{tpu_custom_call.1} parent=23 // pred_fallthru
          _
      $region24: #{tpu_custom_call.1} parent=5 // pred_fallthru
        _
      %p186 = scmp.le.s32.totalorder 1, %s12
      %p187 = scmp.lt.s32.totalorder %s12, 5
      %p188 = pnand %p186, %p187
      %p189 = pneg %p188
      // Predicated region
      $region29: #{tpu_custom_call.1} parent=5 // pred_check
        _
      $region30: #{tpu_custom_call.1} parent=5 // pred_check_branch
        %191 = sbr.rel (%p188) target = $region32
      $region31: #{tpu_custom_call.1} parent=5 // pred_region
        %s192 = ssub.s32 %s12, 1
        %s193 = sand.u32 %s63, 1
        %s194 = scalar_lea.sflag [#allocation7], %s193
        %s195 = sand.u32 %s63, 1
        %s196 = smul.addr %s195, 256
        %s197 = scalar_lea.vmem [#allocation6], %s196
        // Predicated region
        $region33: #{tpu_custom_call.1} parent=31 // pred_check
          %p198 = pneg %p76
        $region34: #{tpu_custom_call.1} parent=31 // pred_check_branch
          %200 = sbr.rel (%p198) target = $region36
        $region35: #{tpu_custom_call.1} parent=31 // pred_region
          %201 = dma.done %s194, 4096
        $region36: #{tpu_custom_call.1} parent=31 // pred_fallthru
          _
        %s202 = smul.u32 16, %s21
        %p203 = scmp.lt.s32.totalorder %s202, 15
        %s204 = scalar_select %p203, %s202, 15
        %s205 = smul.addr %s204, 8
        %s206 = scalar_lea.vmem %s0, %s205
        %p207 = pneg %p50
        %p208 = pneg %p47
        %s209 = sand.u32 %s63, 1
        %s210 = scalar_lea.sflag [#allocation7], %s209
        %s211 = sand.u32 %s63, 1
        %s212 = smul.addr %s211, 256
        %s213 = scalar_lea.vmem [#allocation6], %s212
        %p214 = pneg %p76
        %p215 = pneg %p73
        %s216 = smul.u32 16, %s21
        %p217 = scmp.lt.s32.totalorder %s216, 15
        %s218 = scalar_select %p217, %s216, 15
        %s219 = smul.addr %s218, 8
        %s220 = scalar_lea.vmem %s2, %s219
        %p221 = pneg %p102
        %p222 = pneg %p99
        %p223 = pneg %p128
        %p224 = pneg %p125
        %s225 = smul.u32 16, %s21
        %p226 = scmp.lt.s32.totalorder %s225, 15
        %s227 = scalar_select %p226, %s225, 15
        %s228 = smul.addr %s227, 8
        %s229 = scalar_lea.vmem %s3, %s228
        %s230 = smul.u32 16, %s21
        %p231 = scmp.lt.s32.totalorder %s230, 15
        %s232 = scalar_select %p231, %s230, 15
        %s233 = smul.addr %s232, 8
        %s234 = scalar_lea.vmem %s0, %s233
        %s235 = smul.u32 16, %s21
        %s236 = smul.u32 32, %s22
        %s237 = smul.u32 16, %s21
        %p238 = scmp.lt.s32.totalorder %s237, 15
        %s239 = scalar_select %p238, %s237, 15
        %s240 = smul.addr %s239, 8
        %s241 = scalar_lea.vmem %s2, %s240
        %s242 = smul.u32 16, %s21
        %s243 = smul.u32 16, %s21
        %p244 = scmp.lt.s32.totalorder %s243, 15
        %s245 = scalar_select %p244, %s243, 15
        %s246 = smul.addr %s245, 8
        %s247 = scalar_lea.vmem %s3, %s246
        %s248 = smul.u32 16, %s21
        %v249 = vld [vmem:[%s241] sm:$0xff]
        %v250 = vld [vmem:[%s241 + $0x8] sm:$0xff]
        %v251 = vld [vmem:[%s241 + $0x10] sm:$0xff]
        %v252 = vld [vmem:[%s241 + $0x18] sm:$0xff]
        %v253 = vld [vmem:[%s241 + $0x20] sm:$0xff]
        %v254 = vld [vmem:[%s241 + $0x28] sm:$0xff]
        %v255 = vld [vmem:[%s241 + $0x30] sm:$0xff]
        %v256 = vld [vmem:[%s241 + $0x38] sm:$0xff]
        %v257 = vld [vmem:[%s241 + $0x40] sm:$0xff]
        %v258 = vld [vmem:[%s241 + $0x48] sm:$0xff]
        %v259 = vld [vmem:[%s241 + $0x50] sm:$0xff]
        %v260 = vld [vmem:[%s241 + $0x58] sm:$0xff]
        %v261 = vld [vmem:[%s241 + $0x60] sm:$0xff]
        %v262 = vld [vmem:[%s241 + $0x68] sm:$0xff]
        %v263 = vld [vmem:[%s241 + $0x70] sm:$0xff]
        %v264 = vld [vmem:[%s241 + $0x78] sm:$0xff]
        %p265 = scmp.eq.s32.totalorder %s22, 0
        // Predicated region
        $region37: #{tpu_custom_call.1} parent=31 // pred_check
          %p266 = pneg %p265
        $region38: #{tpu_custom_call.1} parent=31 // pred_check_branch
          %268 = sbr.rel (%p266) target = $region40
        $region39: #{tpu_custom_call.1} parent=31 // pred_region
          %v269 = vld [vmem:[%s234] sm:$0xff]
          %v270 = vld [vmem:[%s234 + $0x8] sm:$0xff]
          %v271 = vld [vmem:[%s234 + $0x10] sm:$0xff]
          %v272 = vld [vmem:[%s234 + $0x18] sm:$0xff]
          %v273 = vld [vmem:[%s234 + $0x20] sm:$0xff]
          %v274 = vld [vmem:[%s234 + $0x28] sm:$0xff]
          %v275 = vld [vmem:[%s234 + $0x30] sm:$0xff]
          %v276 = vld [vmem:[%s234 + $0x38] sm:$0xff]
          %v277 = vld [vmem:[%s234 + $0x40] sm:$0xff]
          %v278 = vld [vmem:[%s234 + $0x48] sm:$0xff]
          %v279 = vld [vmem:[%s234 + $0x50] sm:$0xff]
          %v280 = vld [vmem:[%s234 + $0x58] sm:$0xff]
          %v281 = vld [vmem:[%s234 + $0x60] sm:$0xff]
          %v282 = vld [vmem:[%s234 + $0x68] sm:$0xff]
          %v283 = vld [vmem:[%s234 + $0x70] sm:$0xff]
          %v284 = vld [vmem:[%s234 + $0x78] sm:$0xff]
          %v285 = vmul.f32 %v269, %v269
          %v286 = vmul.f32 %v270, %v270
          %v287 = vmul.f32 %v271, %v271
          %v288 = vmul.f32 %v272, %v272
          %v289 = vmul.f32 %v273, %v273
          %v290 = vmul.f32 %v274, %v274
          %v291 = vmul.f32 %v275, %v275
          %v292 = vmul.f32 %v276, %v276
          %v293 = vmul.f32 %v277, %v277
          %v294 = vmul.f32 %v278, %v278
          %v295 = vmul.f32 %v279, %v279
          %v296 = vmul.f32 %v280, %v280
          %v297 = vmul.f32 %v281, %v281
          %v298 = vmul.f32 %v282, %v282
          %v299 = vmul.f32 %v283, %v283
          %v300 = vmul.f32 %v284, %v284
          %301 = vadd.xlane.f32.xlu0 %v285
          %v302 = vpop.xlane.xlu0 %301
          %303 = vadd.xlane.f32.xlu0 %v286
          %v304 = vpop.xlane.xlu0 %303
          %305 = vadd.xlane.f32.xlu0 %v287
          %v306 = vpop.xlane.xlu0 %305
          %307 = vadd.xlane.f32.xlu0 %v288
          %v308 = vpop.xlane.xlu0 %307
          %309 = vadd.xlane.f32.xlu0 %v289
          %v310 = vpop.xlane.xlu0 %309
          %311 = vadd.xlane.f32.xlu0 %v290
          %v312 = vpop.xlane.xlu0 %311
          %313 = vadd.xlane.f32.xlu0 %v291
          %v314 = vpop.xlane.xlu0 %313
          %315 = vadd.xlane.f32.xlu0 %v292
          %v316 = vpop.xlane.xlu0 %315
          %317 = vadd.xlane.f32.xlu0 %v293
          %v318 = vpop.xlane.xlu0 %317
          %319 = vadd.xlane.f32.xlu0 %v294
          %v320 = vpop.xlane.xlu0 %319
          %321 = vadd.xlane.f32.xlu0 %v295
          %v322 = vpop.xlane.xlu0 %321
          %323 = vadd.xlane.f32.xlu0 %v296
          %v324 = vpop.xlane.xlu0 %323
          %325 = vadd.xlane.f32.xlu0 %v297
          %v326 = vpop.xlane.xlu0 %325
          %327 = vadd.xlane.f32.xlu0 %v298
          %v328 = vpop.xlane.xlu0 %327
          %329 = vadd.xlane.f32.xlu0 %v299
          %v330 = vpop.xlane.xlu0 %329
          %331 = vadd.xlane.f32.xlu0 %v300
          %v332 = vpop.xlane.xlu0 %331
          %v333 = vmax.f32 %v302, 1e-24
          %v334 = vmax.f32 %v304, 1e-24
          %v335 = vmax.f32 %v306, 1e-24
          %v336 = vmax.f32 %v308, 1e-24
          %v337 = vmax.f32 %v310, 1e-24
          %v338 = vmax.f32 %v312, 1e-24
          %v339 = vmax.f32 %v314, 1e-24
          %v340 = vmax.f32 %v316, 1e-24
          %v341 = vmax.f32 %v318, 1e-24
          %v342 = vmax.f32 %v320, 1e-24
          %v343 = vmax.f32 %v322, 1e-24
          %v344 = vmax.f32 %v324, 1e-24
          %v345 = vmax.f32 %v326, 1e-24
          %v346 = vmax.f32 %v328, 1e-24
          %v347 = vmax.f32 %v330, 1e-24
          %v348 = vmax.f32 %v332, 1e-24
          %v349 = vrsqrt.pop %v333
          %v350 = vrsqrt.pop %v334
          %v351 = vrsqrt.pop %v335
          %v352 = vrsqrt.pop %v336
          %v353 = vrsqrt.pop %v337
          %v354 = vrsqrt.pop %v338
          %v355 = vrsqrt.pop %v339
          %v356 = vrsqrt.pop %v340
          %v357 = vrsqrt.pop %v341
          %v358 = vrsqrt.pop %v342
          %v359 = vrsqrt.pop %v343
          %v360 = vrsqrt.pop %v344
          %v361 = vrsqrt.pop %v345
          %v362 = vrsqrt.pop %v346
          %v363 = vrsqrt.pop %v347
          %v364 = vrsqrt.pop %v348
          %v365 = vmul.f32 %v269, %v349
          %v366 = vmul.f32 %v270, %v350
          %v367 = vmul.f32 %v271, %v351
          %v368 = vmul.f32 %v272, %v352
          %v369 = vmul.f32 %v273, %v353
          %v370 = vmul.f32 %v274, %v354
          %v371 = vmul.f32 %v275, %v355
          %v372 = vmul.f32 %v276, %v356
          %v373 = vmul.f32 %v277, %v357
          %v374 = vmul.f32 %v278, %v358
          %v375 = vmul.f32 %v279, %v359
          %v376 = vmul.f32 %v280, %v360
          %v377 = vmul.f32 %v281, %v361
          %v378 = vmul.f32 %v282, %v362
          %v379 = vmul.f32 %v283, %v363
          %v380 = vmul.f32 %v284, %v364
          %381 = vst [vmem:[#allocation2] sm:$0xff] %v365
          %382 = vst [vmem:[#allocation2 + $0x8] sm:$0xff] %v366
          %383 = vst [vmem:[#allocation2 + $0x10] sm:$0xff] %v367
          %384 = vst [vmem:[#allocation2 + $0x18] sm:$0xff] %v368
          %385 = vst [vmem:[#allocation2 + $0x20] sm:$0xff] %v369
          %386 = vst [vmem:[#allocation2 + $0x28] sm:$0xff] %v370
          %387 = vst [vmem:[#allocation2 + $0x30] sm:$0xff] %v371
          %388 = vst [vmem:[#allocation2 + $0x38] sm:$0xff] %v372
          %389 = vst [vmem:[#allocation2 + $0x40] sm:$0xff] %v373
          %390 = vst [vmem:[#allocation2 + $0x48] sm:$0xff] %v374
          %391 = vst [vmem:[#allocation2 + $0x50] sm:$0xff] %v375
          %392 = vst [vmem:[#allocation2 + $0x58] sm:$0xff] %v376
          %393 = vst [vmem:[#allocation2 + $0x60] sm:$0xff] %v377
          %394 = vst [vmem:[#allocation2 + $0x68] sm:$0xff] %v378
          %395 = vst [vmem:[#allocation2 + $0x70] sm:$0xff] %v379
          %396 = vst [vmem:[#allocation2 + $0x78] sm:$0xff] %v380
          %vm397 = vcmask 7168
          %398 = vst.msk [vmem:[#allocation3] sm:$0xff] %vm397, -1e+30
          %399 = vst.msk [vmem:[#allocation3 + $0x8] sm:$0xff] %vm397, -1e+30
          %400 = vst.msk [vmem:[#allocation3 + $0x10] sm:$0xff] %vm397, -1e+30
          %401 = vst.msk [vmem:[#allocation3 + $0x18] sm:$0xff] %vm397, -1e+30
          %402 = vst.msk [vmem:[#allocation3 + $0x20] sm:$0xff] %vm397, -1e+30
          %403 = vst.msk [vmem:[#allocation3 + $0x28] sm:$0xff] %vm397, -1e+30
          %404 = vst.msk [vmem:[#allocation3 + $0x30] sm:$0xff] %vm397, -1e+30
          %405 = vst.msk [vmem:[#allocation3 + $0x38] sm:$0xff] %vm397, -1e+30
          %406 = vst.msk [vmem:[#allocation3 + $0x40] sm:$0xff] %vm397, -1e+30
          %407 = vst.msk [vmem:[#allocation3 + $0x48] sm:$0xff] %vm397, -1e+30
          %408 = vst.msk [vmem:[#allocation3 + $0x50] sm:$0xff] %vm397, -1e+30
          %409 = vst.msk [vmem:[#allocation3 + $0x58] sm:$0xff] %vm397, -1e+30
          %410 = vst.msk [vmem:[#allocation3 + $0x60] sm:$0xff] %vm397, -1e+30
          %411 = vst.msk [vmem:[#allocation3 + $0x68] sm:$0xff] %vm397, -1e+30
          %412 = vst.msk [vmem:[#allocation3 + $0x70] sm:$0xff] %vm397, -1e+30
          %413 = vst.msk [vmem:[#allocation3 + $0x78] sm:$0xff] %vm397, -1e+30
          %414 = vst.msk [vmem:[#allocation4] sm:$0xff] %vm397, 0.0
          %415 = vst.msk [vmem:[#allocation4 + $0x8] sm:$0xff] %vm397, 0.0
          %416 = vst.msk [vmem:[#allocation4 + $0x10] sm:$0xff] %vm397, 0.0
          %417 = vst.msk [vmem:[#allocation4 + $0x18] sm:$0xff] %vm397, 0.0
          %418 = vst.msk [vmem:[#allocation4 + $0x20] sm:$0xff] %vm397, 0.0
          %419 = vst.msk [vmem:[#allocation4 + $0x28] sm:$0xff] %vm397, 0.0
          %420 = vst.msk [vmem:[#allocation4 + $0x30] sm:$0xff] %vm397, 0.0
          %421 = vst.msk [vmem:[#allocation4 + $0x38] sm:$0xff] %vm397, 0.0
          %422 = vst.msk [vmem:[#allocation4 + $0x40] sm:$0xff] %vm397, 0.0
          %423 = vst.msk [vmem:[#allocation4 + $0x48] sm:$0xff] %vm397, 0.0
          %424 = vst.msk [vmem:[#allocation4 + $0x50] sm:$0xff] %vm397, 0.0
          %425 = vst.msk [vmem:[#allocation4 + $0x58] sm:$0xff] %vm397, 0.0
          %426 = vst.msk [vmem:[#allocation4 + $0x60] sm:$0xff] %vm397, 0.0
          %427 = vst.msk [vmem:[#allocation4 + $0x68] sm:$0xff] %vm397, 0.0
          %428 = vst.msk [vmem:[#allocation4 + $0x70] sm:$0xff] %vm397, 0.0
          %429 = vst.msk [vmem:[#allocation4 + $0x78] sm:$0xff] %vm397, 0.0
          %430 = vst.msk [vmem:[#allocation5] sm:$0xff] %vm397, 0.0
          %431 = vst.msk [vmem:[#allocation5 + $0x8] sm:$0xff] %vm397, 0.0
          %432 = vst.msk [vmem:[#allocation5 + $0x10] sm:$0xff] %vm397, 0.0
          %433 = vst.msk [vmem:[#allocation5 + $0x18] sm:$0xff] %vm397, 0.0
          %434 = vst.msk [vmem:[#allocation5 + $0x20] sm:$0xff] %vm397, 0.0
          %435 = vst.msk [vmem:[#allocation5 + $0x28] sm:$0xff] %vm397, 0.0
          %436 = vst.msk [vmem:[#allocation5 + $0x30] sm:$0xff] %vm397, 0.0
          %437 = vst.msk [vmem:[#allocation5 + $0x38] sm:$0xff] %vm397, 0.0
          %438 = vst.msk [vmem:[#allocation5 + $0x40] sm:$0xff] %vm397, 0.0
          %439 = vst.msk [vmem:[#allocation5 + $0x48] sm:$0xff] %vm397, 0.0
          %440 = vst.msk [vmem:[#allocation5 + $0x50] sm:$0xff] %vm397, 0.0
          %441 = vst.msk [vmem:[#allocation5 + $0x58] sm:$0xff] %vm397, 0.0
          %442 = vst.msk [vmem:[#allocation5 + $0x60] sm:$0xff] %vm397, 0.0
          %443 = vst.msk [vmem:[#allocation5 + $0x68] sm:$0xff] %vm397, 0.0
          %444 = vst.msk [vmem:[#allocation5 + $0x70] sm:$0xff] %vm397, 0.0
          %445 = vst.msk [vmem:[#allocation5 + $0x78] sm:$0xff] %vm397, 0.0
        $region40: #{tpu_custom_call.1} parent=31 // pred_fallthru
          _
        %v446 = vld [vmem:[%s197] sm:$0xff]
        %v447 = vld [vmem:[%s197 + $0x8] sm:$0xff]
        %v448 = vld [vmem:[%s197 + $0x10] sm:$0xff]
        %v449 = vld [vmem:[%s197 + $0x18] sm:$0xff]
        %v450 = vld [vmem:[%s197 + $0x20] sm:$0xff]
        %v451 = vld [vmem:[%s197 + $0x28] sm:$0xff]
        %v452 = vld [vmem:[%s197 + $0x30] sm:$0xff]
        %v453 = vld [vmem:[%s197 + $0x38] sm:$0xff]
        %v454 = vld [vmem:[%s197 + $0x40] sm:$0xff]
        %v455 = vld [vmem:[%s197 + $0x48] sm:$0xff]
        %v456 = vld [vmem:[%s197 + $0x50] sm:$0xff]
        %v457 = vld [vmem:[%s197 + $0x58] sm:$0xff]
        %v458 = vld [vmem:[%s197 + $0x60] sm:$0xff]
        %v459 = vld [vmem:[%s197 + $0x68] sm:$0xff]
        %v460 = vld [vmem:[%s197 + $0x70] sm:$0xff]
        %v461 = vld [vmem:[%s197 + $0x78] sm:$0xff]
        %v462 = vld [vmem:[%s197 + $0x80] sm:$0xff]
        %v463 = vld [vmem:[%s197 + $0x88] sm:$0xff]
        %v464 = vld [vmem:[%s197 + $0x90] sm:$0xff]
        %v465 = vld [vmem:[%s197 + $0x98] sm:$0xff]
        %v466 = vld [vmem:[%s197 + $0xa0] sm:$0xff]
        %v467 = vld [vmem:[%s197 + $0xa8] sm:$0xff]
        %v468 = vld [vmem:[%s197 + $0xb0] sm:$0xff]
        %v469 = vld [vmem:[%s197 + $0xb8] sm:$0xff]
        %v470 = vld [vmem:[%s197 + $0xc0] sm:$0xff]
        %v471 = vld [vmem:[%s197 + $0xc8] sm:$0xff]
        %v472 = vld [vmem:[%s197 + $0xd0] sm:$0xff]
        %v473 = vld [vmem:[%s197 + $0xd8] sm:$0xff]
        %v474 = vld [vmem:[%s197 + $0xe0] sm:$0xff]
        %v475 = vld [vmem:[%s197 + $0xe8] sm:$0xff]
        %v476 = vld [vmem:[%s197 + $0xf0] sm:$0xff]
        %v477 = vld [vmem:[%s197 + $0xf8] sm:$0xff]
        %v478 = vmul.f32 %v446, %v446
        %v479 = vmul.f32 %v447, %v447
        %v480 = vmul.f32 %v448, %v448
        %v481 = vmul.f32 %v449, %v449
        %v482 = vmul.f32 %v450, %v450
        %v483 = vmul.f32 %v451, %v451
        %v484 = vmul.f32 %v452, %v452
        %v485 = vmul.f32 %v453, %v453
        %v486 = vmul.f32 %v454, %v454
        %v487 = vmul.f32 %v455, %v455
        %v488 = vmul.f32 %v456, %v456
        %v489 = vmul.f32 %v457, %v457
        %v490 = vmul.f32 %v458, %v458
        %v491 = vmul.f32 %v459, %v459
        %v492 = vmul.f32 %v460, %v460
        %v493 = vmul.f32 %v461, %v461
        %v494 = vmul.f32 %v462, %v462
        %v495 = vmul.f32 %v463, %v463
        %v496 = vmul.f32 %v464, %v464
        %v497 = vmul.f32 %v465, %v465
        %v498 = vmul.f32 %v466, %v466
        %v499 = vmul.f32 %v467, %v467
        %v500 = vmul.f32 %v468, %v468
        %v501 = vmul.f32 %v469, %v469
        %v502 = vmul.f32 %v470, %v470
        %v503 = vmul.f32 %v471, %v471
        %v504 = vmul.f32 %v472, %v472
        %v505 = vmul.f32 %v473, %v473
        %v506 = vmul.f32 %v474, %v474
        %v507 = vmul.f32 %v475, %v475
        %v508 = vmul.f32 %v476, %v476
        %v509 = vmul.f32 %v477, %v477
        %510 = vmatprep.subr.mxu0 0.0
        %511 = vmatpush1.xpose.msra.mxu0 %v478
        %512 = vmatprep.subr.mxu0 0.0
        %513 = vmatpush1.xpose.msra.mxu0 %v479
        %514 = vmatprep.subr.mxu0 0.0
        %515 = vmatpush1.xpose.msra.mxu0 %v480
        %516 = vmatprep.subr.mxu0 0.0
        %517 = vmatpush1.xpose.msra.mxu0 %v481
        %518 = vmatprep.subr.mxu0 0.0
        %519 = vmatpush1.xpose.msra.mxu0 %v482
        %520 = vmatprep.subr.mxu0 0.0
        %521 = vmatpush1.xpose.msra.mxu0 %v483
        %522 = vmatprep.subr.mxu0 0.0
        %523 = vmatpush1.xpose.msra.mxu0 %v484
        %524 = vmatprep.subr.mxu0 0.0
        %525 = vmatpush1.xpose.msra.mxu0 %v485
        %526 = vmatprep.subr.mxu0 0.0
        %527 = vmatpush1.xpose.msra.mxu0 %v486
        %528 = vmatprep.subr.mxu0 0.0
        %529 = vmatpush1.xpose.msra.mxu0 %v487
        %530 = vmatprep.subr.mxu0 0.0
        %531 = vmatpush1.xpose.msra.mxu0 %v488
        %532 = vmatprep.subr.mxu0 0.0
        %533 = vmatpush1.xpose.msra.mxu0 %v489
        %534 = vmatprep.subr.mxu0 0.0
        %535 = vmatpush1.xpose.msra.mxu0 %v490
        %536 = vmatprep.subr.mxu0 0.0
        %537 = vmatpush1.xpose.msra.mxu0 %v491
        %538 = vmatprep.subr.mxu0 0.0
        %539 = vmatpush1.xpose.msra.mxu0 %v492
        %540 = vmatprep.subr.mxu0 0.0
        %541 = vmatpush1.xpose.msra.mxu0 %v493
        %542 = vmatprep.subr.mxu0 0.0
        %543 = vmatpush1.xpose.msra.mxu0 %v494
        %544 = vmatprep.subr.mxu0 0.0
        %545 = vmatpush1.xpose.msra.mxu0 %v495
        %546 = vmatprep.subr.mxu0 0.0
        %547 = vmatpush1.xpose.msra.mxu0 %v496
        %548 = vmatprep.subr.mxu0 0.0
        %549 = vmatpush1.xpose.msra.mxu0 %v497
        %550 = vmatprep.subr.mxu0 0.0
        %551 = vmatpush1.xpose.msra.mxu0 %v498
        %552 = vmatprep.subr.mxu0 0.0
        %553 = vmatpush1.xpose.msra.mxu0 %v499
        %554 = vmatprep.subr.mxu0 0.0
        %555 = vmatpush1.xpose.msra.mxu0 %v500
        %556 = vmatprep.subr.mxu0 0.0
        %557 = vmatpush1.xpose.msra.mxu0 %v501
        %558 = vmatprep.subr.mxu0 0.0
        %559 = vmatpush1.xpose.msra.mxu0 %v502
        %560 = vmatprep.subr.mxu0 0.0
        %561 = vmatpush1.xpose.msra.mxu0 %v503
        %562 = vmatprep.subr.mxu0 0.0
        %563 = vmatpush1.xpose.msra.mxu0 %v504
        %564 = vmatprep.subr.mxu0 0.0
        %565 = vmatpush1.xpose.msra.mxu0 %v505
        %566 = vmatprep.subr.mxu0 0.0
        %567 = vmatpush1.xpose.msra.mxu0 %v506
        %568 = vmatprep.subr.mxu0 0.0
        %569 = vmatpush1.xpose.msra.mxu0 %v507
        %570 = vmatprep.subr.mxu0 0.0
        %571 = vmatpush1.xpose.msra.mxu0 %v508
        %572 = vmatprep.subr.mxu0 0.0
        %573 = vmatpush1.xpose.msra.mxu0 %v509
        %574 = vmatprep.mubr.f32.mxu0 0.0
        %575 = vmatmul.mubr.f32.gmra.mrb[0].mxu0 1.0
        %v576 = vpop.f32.mrb[0].mxu0
        %v577 = vadd.f32 0.0, %v576
        %v578 = vpop.f32.mrb[0].mxu0
        %v579 = vadd.f32 0.0, %v578
        %580 = vdwg.mxu0
        %v581 = vmax.f32 %v577, 1e-24
        %v582 = vmax.f32 %v579, 1e-24
        %v583 = vrsqrt.pop %v581
        %v584 = vrsqrt.pop %v582
        %v585 = vmul.f32 %v583, 64.0
        %v586 = vmul.f32 %v584, 64.0
        %v587 = vld [vmem:[#allocation2] sm:$0xff]
        %v588 = vld [vmem:[#allocation2 + $0x8] sm:$0xff]
        %v589 = vld [vmem:[#allocation2 + $0x10] sm:$0xff]
        %v590 = vld [vmem:[#allocation2 + $0x18] sm:$0xff]
        %v591 = vld [vmem:[#allocation2 + $0x20] sm:$0xff]
        %v592 = vld [vmem:[#allocation2 + $0x28] sm:$0xff]
        %v593 = vld [vmem:[#allocation2 + $0x30] sm:$0xff]
        %v594 = vld [vmem:[#allocation2 + $0x38] sm:$0xff]
        %v595 = vld [vmem:[#allocation2 + $0x40] sm:$0xff]
        %v596 = vld [vmem:[#allocation2 + $0x48] sm:$0xff]
        %v597 = vld [vmem:[#allocation2 + $0x50] sm:$0xff]
        %v598 = vld [vmem:[#allocation2 + $0x58] sm:$0xff]
        %v599 = vld [vmem:[#allocation2 + $0x60] sm:$0xff]
        %v600 = vld [vmem:[#allocation2 + $0x68] sm:$0xff]
        %v601 = vld [vmem:[#allocation2 + $0x70] sm:$0xff]
        %v602 = vld [vmem:[#allocation2 + $0x78] sm:$0xff]
        %603 = vmatprep.subr.mxu0 0.0
        %604 = vmatpush1.xpose.msra.mxu0 %v446
        %605 = vmatprep.subr.mxu0 0.0
        %606 = vmatpush1.xpose.msra.mxu0 %v447
        %607 = vmatprep.subr.mxu0 0.0
        %608 = vmatpush1.xpose.msra.mxu0 %v448
        %609 = vmatprep.subr.mxu0 0.0
        %610 = vmatpush1.xpose.msra.mxu0 %v449
        %611 = vmatprep.subr.mxu0 0.0
        %612 = vmatpush1.xpose.msra.mxu0 %v450
        %613 = vmatprep.subr.mxu0 0.0
        %614 = vmatpush1.xpose.msra.mxu0 %v451
        %615 = vmatprep.subr.mxu0 0.0
        %616 = vmatpush1.xpose.msra.mxu0 %v452
        %617 = vmatprep.subr.mxu0 0.0
        %618 = vmatpush1.xpose.msra.mxu0 %v453
        %619 = vmatprep.subr.mxu0 0.0
        %620 = vmatpush1.xpose.msra.mxu0 %v454
        %621 = vmatprep.subr.mxu0 0.0
        %622 = vmatpush1.xpose.msra.mxu0 %v455
        %623 = vmatprep.subr.mxu0 0.0
        %624 = vmatpush1.xpose.msra.mxu0 %v456
        %625 = vmatprep.subr.mxu0 0.0
        %626 = vmatpush1.xpose.msra.mxu0 %v457
        %627 = vmatprep.subr.mxu0 0.0
        %628 = vmatpush1.xpose.msra.mxu0 %v458
        %629 = vmatprep.subr.mxu0 0.0
        %630 = vmatpush1.xpose.msra.mxu0 %v459
        %631 = vmatprep.subr.mxu0 0.0
        %632 = vmatpush1.xpose.msra.mxu0 %v460
        %633 = vmatprep.subr.mxu0 0.0
        %634 = vmatpush1.xpose.msra.mxu0 %v461
        %635 = vmatprep.subr.mxu0 0.0
        %636 = vmatpush1.xpose.msra.mxu0 %v462
        %637 = vmatprep.subr.mxu0 0.0
        %638 = vmatpush1.xpose.msra.mxu0 %v463
        %639 = vmatprep.subr.mxu0 0.0
        %640 = vmatpush1.xpose.msra.mxu0 %v464
        %641 = vmatprep.subr.mxu0 0.0
        %642 = vmatpush1.xpose.msra.mxu0 %v465
        %643 = vmatprep.subr.mxu0 0.0
        %644 = vmatpush1.xpose.msra.mxu0 %v466
        %645 = vmatprep.subr.mxu0 0.0
        %646 = vmatpush1.xpose.msra.mxu0 %v467
        %647 = vmatprep.subr.mxu0 0.0
        %648 = vmatpush1.xpose.msra.mxu0 %v468
        %649 = vmatprep.subr.mxu0 0.0
        %650 = vmatpush1.xpose.msra.mxu0 %v469
        %651 = vmatprep.subr.mxu0 0.0
        %652 = vmatpush1.xpose.msra.mxu0 %v470
        %653 = vmatprep.subr.mxu0 0.0
        %654 = vmatpush1.xpose.msra.mxu0 %v471
        %655 = vmatprep.subr.mxu0 0.0
        %656 = vmatpush1.xpose.msra.mxu0 %v472
        %657 = vmatprep.subr.mxu0 0.0
        %658 = vmatpush1.xpose.msra.mxu0 %v473
        %659 = vmatprep.subr.mxu0 0.0
        %660 = vmatpush1.xpose.msra.mxu0 %v474
        %661 = vmatprep.subr.mxu0 0.0
        %662 = vmatpush1.xpose.msra.mxu0 %v475
        %663 = vmatprep.subr.mxu0 0.0
        %664 = vmatpush1.xpose.msra.mxu0 %v476
        %665 = vmatprep.subr.mxu0 0.0
        %666 = vmatpush1.xpose.msra.mxu0 %v477
        %667 = vmatprep.mubr.f32.mxu0 0.0
        %668 = vmatmul.mubr.f32.gmra.mrb[0].mxu0 %v587
        %v669 = vpop.f32.mrb[0].mxu0
        %v670 = vadd.f32 0.0, %v669
        %v671 = vpop.f32.mrb[0].mxu0
        %v672 = vadd.f32 0.0, %v671
        %673 = vmatprep.mubr.f32.mxu0 0.0
        %674 = vmatmul.mubr.f32.gmra.mrb[0].mxu0 %v588
        %v675 = vpop.f32.mrb[0].mxu0
        %v676 = vadd.f32 0.0, %v675
        %v677 = vpop.f32.mrb[0].mxu0
        %v678 = vadd.f32 0.0, %v677
        %679 = vmatprep.mubr.f32.mxu0 0.0
        %680 = vmatmul.mubr.f32.gmra.mrb[0].mxu0 %v589
        %v681 = vpop.f32.mrb[0].mxu0
        %v682 = vadd.f32 0.0, %v681
        %v683 = vpop.f32.mrb[0].mxu0
        %v684 = vadd.f32 0.0, %v683
        %685 = vmatprep.mubr.f32.mxu0 0.0
        %686 = vmatmul.mubr.f32.gmra.mrb[0].mxu0 %v590
        %v687 = vpop.f32.mrb[0].mxu0
        %v688 = vadd.f32 0.0, %v687
        %v689 = vpop.f32.mrb[0].mxu0
        %v690 = vadd.f32 0.0, %v689
        %691 = vmatprep.mubr.f32.mxu0 0.0
        %692 = vmatmul.mubr.f32.gmra.mrb[0].mxu0 %v591
        %v693 = vpop.f32.mrb[0].mxu0
        %v694 = vadd.f32 0.0, %v693
        %v695 = vpop.f32.mrb[0].mxu0
        %v696 = vadd.f32 0.0, %v695
        %697 = vmatprep.mubr.f32.mxu0 0.0
        %698 = vmatmul.mubr.f32.gmra.mrb[0].mxu0 %v592
        %v699 = vpop.f32.mrb[0].mxu0
        %v700 = vadd.f32 0.0, %v699
        %v701 = vpop.f32.mrb[0].mxu0
        %v702 = vadd.f32 0.0, %v701
        %703 = vmatprep.mubr.f32.mxu0 0.0
        %704 = vmatmul.mubr.f32.gmra.mrb[0].mxu0 %v593
        %v705 = vpop.f32.mrb[0].mxu0
        %v706 = vadd.f32 0.0, %v705
        %v707 = vpop.f32.mrb[0].mxu0
        %v708 = vadd.f32 0.0, %v707
        %709 = vmatprep.mubr.f32.mxu0 0.0
        %710 = vmatmul.mubr.f32.gmra.mrb[0].mxu0 %v594
        %v711 = vpop.f32.mrb[0].mxu0
        %v712 = vadd.f32 0.0, %v711
        %v713 = vpop.f32.mrb[0].mxu0
        %v714 = vadd.f32 0.0, %v713
        %715 = vmatprep.mubr.f32.mxu0 0.0
        %716 = vmatmul.mubr.f32.gmra.mrb[0].mxu0 %v595
        %v717 = vpop.f32.mrb[0].mxu0
        %v718 = vadd.f32 0.0, %v717
        %v719 = vpop.f32.mrb[0].mxu0
        %v720 = vadd.f32 0.0, %v719
        %721 = vmatprep.mubr.f32.mxu0 0.0
        %722 = vmatmul.mubr.f32.gmra.mrb[0].mxu0 %v596
        %v723 = vpop.f32.mrb[0].mxu0
        %v724 = vadd.f32 0.0, %v723
        %v725 = vpop.f32.mrb[0].mxu0
        %v726 = vadd.f32 0.0, %v725
        %727 = vmatprep.mubr.f32.mxu0 0.0
        %728 = vmatmul.mubr.f32.gmra.mrb[0].mxu0 %v597
        %v729 = vpop.f32.mrb[0].mxu0
        %v730 = vadd.f32 0.0, %v729
        %v731 = vpop.f32.mrb[0].mxu0
        %v732 = vadd.f32 0.0, %v731
        %733 = vmatprep.mubr.f32.mxu0 0.0
        %734 = vmatmul.mubr.f32.gmra.mrb[0].mxu0 %v598
        %v735 = vpop.f32.mrb[0].mxu0
        %v736 = vadd.f32 0.0, %v735
        %v737 = vpop.f32.mrb[0].mxu0
        %v738 = vadd.f32 0.0, %v737
        %739 = vmatprep.mubr.f32.mxu0 0.0
        %740 = vmatmul.mubr.f32.gmra.mrb[0].mxu0 %v599
        %v741 = vpop.f32.mrb[0].mxu0
        %v742 = vadd.f32 0.0, %v741
        %v743 = vpop.f32.mrb[0].mxu0
        %v744 = vadd.f32 0.0, %v743
        %745 = vmatprep.mubr.f32.mxu0 0.0
        %746 = vmatmul.mubr.f32.gmra.mrb[0].mxu0 %v600
        %v747 = vpop.f32.mrb[0].mxu0
        %v748 = vadd.f32 0.0, %v747
        %v749 = vpop.f32.mrb[0].mxu0
        %v750 = vadd.f32 0.0, %v749
        %751 = vmatprep.mubr.f32.mxu0 0.0
        %752 = vmatmul.mubr.f32.gmra.mrb[0].mxu0 %v601
        %v753 = vpop.f32.mrb[0].mxu0
        %v754 = vadd.f32 0.0, %v753
        %v755 = vpop.f32.mrb[0].mxu0
        %v756 = vadd.f32 0.0, %v755
        %757 = vmatprep.mubr.f32.mxu0 0.0
        %758 = vmatmul.mubr.f32.gmra.mrb[0].mxu0 %v602
        %v759 = vpop.f32.mrb[0].mxu0
        %v760 = vadd.f32 0.0, %v759
        %v761 = vpop.f32.mrb[0].mxu0
        %v762 = vadd.f32 0.0, %v761
        %763 = vdwg.mxu0
        %v764 = vlaneseq
        %v765 = vshrl.u32 %v764, 7
        %v766 = vsub.s32 0, %v765
        %v767 = vrot.slane %v585, %v766
        %v768 = vlaneseq
        %v769 = vshrl.u32 %v768, 7
        %v770 = vsub.s32 0, %v769
        %v771 = vrot.slane %v586, %v770
        %v772 = vmul.f32 %v670, %v767
        %v773 = vmul.f32 %v672, %v771
        %v774 = vmul.f32 %v676, %v767
        %v775 = vmul.f32 %v678, %v771
        %v776 = vmul.f32 %v682, %v767
        %v777 = vmul.f32 %v684, %v771
        %v778 = vmul.f32 %v688, %v767
        %v779 = vmul.f32 %v690, %v771
        %v780 = vmul.f32 %v694, %v767
        %v781 = vmul.f32 %v696, %v771
        %v782 = vmul.f32 %v700, %v767
        %v783 = vmul.f32 %v702, %v771
        %v784 = vmul.f32 %v706, %v767
        %v785 = vmul.f32 %v708, %v771
        %v786 = vmul.f32 %v712, %v767
        %v787 = vmul.f32 %v714, %v771
        %v788 = vmul.f32 %v718, %v767
        %v789 = vmul.f32 %v720, %v771
        %v790 = vmul.f32 %v724, %v767
        %v791 = vmul.f32 %v726, %v771
        %v792 = vmul.f32 %v730, %v767
        %v793 = vmul.f32 %v732, %v771
        %v794 = vmul.f32 %v736, %v767
        %v795 = vmul.f32 %v738, %v771
        %v796 = vmul.f32 %v742, %v767
        %v797 = vmul.f32 %v744, %v771
        %v798 = vmul.f32 %v748, %v767
        %v799 = vmul.f32 %v750, %v771
        %v800 = vmul.f32 %v754, %v767
        %v801 = vmul.f32 %v756, %v771
        %v802 = vmul.f32 %v760, %v767
        %v803 = vmul.f32 %v762, %v771
        %s804 = smul.u32 %s22, 256
        %v805 = vlaneseq
        %v806 = vand.u32 %v805, 127
        %v807 = vadd.s32 %v806, 128
        %v808 = vstv %s804
        %v809 = vadd.s32 %v808, %v806
        %v810 = vadd.s32 %v808, %v807
        %811 = vset.pattern.permute.xlu0 0
        %812 = vperm.xlu0 %811, %v249
        %v813 = vpop.permute.xlu0 %812
        %814 = vset.pattern.permute.xlu0 0
        %815 = vperm.xlu0 %814, %v250
        %v816 = vpop.permute.xlu0 %815
        %817 = vset.pattern.permute.xlu0 0
        %818 = vperm.xlu0 %817, %v251
        %v819 = vpop.permute.xlu0 %818
        %820 = vset.pattern.permute.xlu0 0
        %821 = vperm.xlu0 %820, %v252
        %v822 = vpop.permute.xlu0 %821
        %823 = vset.pattern.permute.xlu0 0
        %824 = vperm.xlu0 %823, %v253
        %v825 = vpop.permute.xlu0 %824
        %826 = vset.pattern.permute.xlu0 0
        %827 = vperm.xlu0 %826, %v254
        %v828 = vpop.permute.xlu0 %827
        %829 = vset.pattern.permute.xlu0 0
        %830 = vperm.xlu0 %829, %v255
        %v831 = vpop.permute.xlu0 %830
        %832 = vset.pattern.permute.xlu0 0
        %833 = vperm.xlu0 %832, %v256
        %v834 = vpop.permute.xlu0 %833
        %835 = vset.pattern.permute.xlu0 0
        %836 = vperm.xlu0 %835, %v257
        %v837 = vpop.permute.xlu0 %836
        %838 = vset.pattern.permute.xlu0 0
        %839 = vperm.xlu0 %838, %v258
        %v840 = vpop.permute.xlu0 %839
        %841 = vset.pattern.permute.xlu0 0
        %842 = vperm.xlu0 %841, %v259
        %v843 = vpop.permute.xlu0 %842
        %844 = vset.pattern.permute.xlu0 0
        %845 = vperm.xlu0 %844, %v260
        %v846 = vpop.permute.xlu0 %845
        %847 = vset.pattern.permute.xlu0 0
        %848 = vperm.xlu0 %847, %v261
        %v849 = vpop.permute.xlu0 %848
        %850 = vset.pattern.permute.xlu0 0
        %851 = vperm.xlu0 %850, %v262
        %v852 = vpop.permute.xlu0 %851
        %853 = vset.pattern.permute.xlu0 0
        %854 = vperm.xlu0 %853, %v263
        %v855 = vpop.permute.xlu0 %854
        %856 = vset.pattern.permute.xlu0 0
        %857 = vperm.xlu0 %856, %v264
        %v858 = vpop.permute.xlu0 %857
        %vm859 = vcmp.eq.s32.totalorder %v809, %v813
        %vm860 = vcmp.eq.s32.totalorder %v810, %v813
        %vm861 = vcmp.eq.s32.totalorder %v809, %v816
        %vm862 = vcmp.eq.s32.totalorder %v810, %v816
        %vm863 = vcmp.eq.s32.totalorder %v809, %v819
        %vm864 = vcmp.eq.s32.totalorder %v810, %v819
        %vm865 = vcmp.eq.s32.totalorder %v809, %v822
        %vm866 = vcmp.eq.s32.totalorder %v810, %v822
        %vm867 = vcmp.eq.s32.totalorder %v809, %v825
        %vm868 = vcmp.eq.s32.totalorder %v810, %v825
        %vm869 = vcmp.eq.s32.totalorder %v809, %v828
        %vm870 = vcmp.eq.s32.totalorder %v810, %v828
        %vm871 = vcmp.eq.s32.totalorder %v809, %v831
        %vm872 = vcmp.eq.s32.totalorder %v810, %v831
        %vm873 = vcmp.eq.s32.totalorder %v809, %v834
        %vm874 = vcmp.eq.s32.totalorder %v810, %v834
        %vm875 = vcmp.eq.s32.totalorder %v809, %v837
        %vm876 = vcmp.eq.s32.totalorder %v810, %v837
        %vm877 = vcmp.eq.s32.totalorder %v809, %v840
        %vm878 = vcmp.eq.s32.totalorder %v810, %v840
        %vm879 = vcmp.eq.s32.totalorder %v809, %v843
        %vm880 = vcmp.eq.s32.totalorder %v810, %v843
        %vm881 = vcmp.eq.s32.totalorder %v809, %v846
        %vm882 = vcmp.eq.s32.totalorder %v810, %v846
        %vm883 = vcmp.eq.s32.totalorder %v809, %v849
        %vm884 = vcmp.eq.s32.totalorder %v810, %v849
        %vm885 = vcmp.eq.s32.totalorder %v809, %v852
        %vm886 = vcmp.eq.s32.totalorder %v810, %v852
        %vm887 = vcmp.eq.s32.totalorder %v809, %v855
        %vm888 = vcmp.eq.s32.totalorder %v810, %v855
        %vm889 = vcmp.eq.s32.totalorder %v809, %v858
        %vm890 = vcmp.eq.s32.totalorder %v810, %v858
        %vm891 = vcmp.ge.s32.totalorder %v249, 0
        %vm892 = vcmp.ge.s32.totalorder %v250, 0
        %vm893 = vcmp.ge.s32.totalorder %v251, 0
        %vm894 = vcmp.ge.s32.totalorder %v252, 0
        %vm895 = vcmp.ge.s32.totalorder %v253, 0
        %vm896 = vcmp.ge.s32.totalorder %v254, 0
        %vm897 = vcmp.ge.s32.totalorder %v255, 0
        %vm898 = vcmp.ge.s32.totalorder %v256, 0
        %vm899 = vcmp.ge.s32.totalorder %v257, 0
        %vm900 = vcmp.ge.s32.totalorder %v258, 0
        %vm901 = vcmp.ge.s32.totalorder %v259, 0
        %vm902 = vcmp.ge.s32.totalorder %v260, 0
        %vm903 = vcmp.ge.s32.totalorder %v261, 0
        %vm904 = vcmp.ge.s32.totalorder %v262, 0
        %vm905 = vcmp.ge.s32.totalorder %v263, 0
        %vm906 = vcmp.ge.s32.totalorder %v264, 0
        %v907 = vsel %vm891, 1, 0
        %v908 = vsel %vm892, 1, 0
        %v909 = vsel %vm893, 1, 0
        %v910 = vsel %vm894, 1, 0
        %v911 = vsel %vm895, 1, 0
        %v912 = vsel %vm896, 1, 0
        %v913 = vsel %vm897, 1, 0
        %v914 = vsel %vm898, 1, 0
        %v915 = vsel %vm899, 1, 0
        %v916 = vsel %vm900, 1, 0
        %v917 = vsel %vm901, 1, 0
        %v918 = vsel %vm902, 1, 0
        %v919 = vsel %vm903, 1, 0
        %v920 = vsel %vm904, 1, 0
        %v921 = vsel %vm905, 1, 0
        %v922 = vsel %vm906, 1, 0
        %923 = vset.pattern.permute.xlu0 0
        %924 = vperm.xlu0 %923, %v907
        %v925 = vpop.permute.xlu0 %924
        %926 = vset.pattern.permute.xlu0 0
        %927 = vperm.xlu0 %926, %v908
        %v928 = vpop.permute.xlu0 %927
        %929 = vset.pattern.permute.xlu0 0
        %930 = vperm.xlu0 %929, %v909
        %v931 = vpop.permute.xlu0 %930
        %932 = vset.pattern.permute.xlu0 0
        %933 = vperm.xlu0 %932, %v910
        %v934 = vpop.permute.xlu0 %933
        %935 = vset.pattern.permute.xlu0 0
        %936 = vperm.xlu0 %935, %v911
        %v937 = vpop.permute.xlu0 %936
        %938 = vset.pattern.permute.xlu0 0
        %939 = vperm.xlu0 %938, %v912
        %v940 = vpop.permute.xlu0 %939
        %941 = vset.pattern.permute.xlu0 0
        %942 = vperm.xlu0 %941, %v913
        %v943 = vpop.permute.xlu0 %942
        %944 = vset.pattern.permute.xlu0 0
        %945 = vperm.xlu0 %944, %v914
        %v946 = vpop.permute.xlu0 %945
        %947 = vset.pattern.permute.xlu0 0
        %948 = vperm.xlu0 %947, %v915
        %v949 = vpop.permute.xlu0 %948
        %950 = vset.pattern.permute.xlu0 0
        %951 = vperm.xlu0 %950, %v916
        %v952 = vpop.permute.xlu0 %951
        %953 = vset.pattern.permute.xlu0 0
        %954 = vperm.xlu0 %953, %v917
        %v955 = vpop.permute.xlu0 %954
        %956 = vset.pattern.permute.xlu0 0
        %957 = vperm.xlu0 %956, %v918
        %v958 = vpop.permute.xlu0 %957
        %959 = vset.pattern.permute.xlu0 0
        %960 = vperm.xlu0 %959, %v919
        %v961 = vpop.permute.xlu0 %960
        %962 = vset.pattern.permute.xlu0 0
        %963 = vperm.xlu0 %962, %v920
        %v964 = vpop.permute.xlu0 %963
        %965 = vset.pattern.permute.xlu0 0
        %966 = vperm.xlu0 %965, %v921
        %v967 = vpop.permute.xlu0 %966
        %968 = vset.pattern.permute.xlu0 0
        %969 = vperm.xlu0 %968, %v922
        %v970 = vpop.permute.xlu0 %969
        %vm971 = vcmp.eq.s32.totalorder %v925, 1
        %vm972 = vcmp.eq.s32.totalorder %v928, 1
        %vm973 = vcmp.eq.s32.totalorder %v931, 1
        %vm974 = vcmp.eq.s32.totalorder %v934, 1
        %vm975 = vcmp.eq.s32.totalorder %v937, 1
        %vm976 = vcmp.eq.s32.totalorder %v940, 1
        %vm977 = vcmp.eq.s32.totalorder %v943, 1
        %vm978 = vcmp.eq.s32.totalorder %v946, 1
        %vm979 = vcmp.eq.s32.totalorder %v949, 1
        %vm980 = vcmp.eq.s32.totalorder %v952, 1
        %vm981 = vcmp.eq.s32.totalorder %v955, 1
        %vm982 = vcmp.eq.s32.totalorder %v958, 1
        %vm983 = vcmp.eq.s32.totalorder %v961, 1
        %vm984 = vcmp.eq.s32.totalorder %v964, 1
        %vm985 = vcmp.eq.s32.totalorder %v967, 1
        %vm986 = vcmp.eq.s32.totalorder %v970, 1
        %vm987 = vmand %vm859, %vm971
        %vm988 = vmand %vm860, %vm971
        %vm989 = vmand %vm861, %vm972
        %vm990 = vmand %vm862, %vm972
        %vm991 = vmand %vm863, %vm973
        %vm992 = vmand %vm864, %vm973
        %vm993 = vmand %vm865, %vm974
        %vm994 = vmand %vm866, %vm974
        %vm995 = vmand %vm867, %vm975
        %vm996 = vmand %vm868, %vm975
        %vm997 = vmand %vm869, %vm976
        %vm998 = vmand %vm870, %vm976
        %vm999 = vmand %vm871, %vm977
        %vm1000 = vmand %vm872, %vm977
        %vm1001 = vmand %vm873, %vm978
        %vm1002 = vmand %vm874, %vm978
        %vm1003 = vmand %vm875, %vm979
        %vm1004 = vmand %vm876, %vm979
        %vm1005 = vmand %vm877, %vm980
        %vm1006 = vmand %vm878, %vm980
        %vm1007 = vmand %vm879, %vm981
        %vm1008 = vmand %vm880, %vm981
        %vm1009 = vmand %vm881, %vm982
        %vm1010 = vmand %vm882, %vm982
        %vm1011 = vmand %vm883, %vm983
        %vm1012 = vmand %vm884, %vm983
        %vm1013 = vmand %vm885, %vm984
        %vm1014 = vmand %vm886, %vm984
        %vm1015 = vmand %vm887, %vm985
        %vm1016 = vmand %vm888, %vm985
        %vm1017 = vmand %vm889, %vm986
        %vm1018 = vmand %vm890, %vm986
        %v1019 = vsub.f32 %v772, 25.6
        %v1020 = vsub.f32 %v773, 25.6
        %v1021 = vsub.f32 %v774, 25.6
        %v1022 = vsub.f32 %v775, 25.6
        %v1023 = vsub.f32 %v776, 25.6
        %v1024 = vsub.f32 %v777, 25.6
        %v1025 = vsub.f32 %v778, 25.6
        %v1026 = vsub.f32 %v779, 25.6
        %v1027 = vsub.f32 %v780, 25.6
        %v1028 = vsub.f32 %v781, 25.6
        %v1029 = vsub.f32 %v782, 25.6
        %v1030 = vsub.f32 %v783, 25.6
        %v1031 = vsub.f32 %v784, 25.6
        %v1032 = vsub.f32 %v785, 25.6
        %v1033 = vsub.f32 %v786, 25.6
        %v1034 = vsub.f32 %v787, 25.6
        %v1035 = vsub.f32 %v788, 25.6
        %v1036 = vsub.f32 %v789, 25.6
        %v1037 = vsub.f32 %v790, 25.6
        %v1038 = vsub.f32 %v791, 25.6
        %v1039 = vsub.f32 %v792, 25.6
        %v1040 = vsub.f32 %v793, 25.6
        %v1041 = vsub.f32 %v794, 25.6
        %v1042 = vsub.f32 %v795, 25.6
        %v1043 = vsub.f32 %v796, 25.6
        %v1044 = vsub.f32 %v797, 25.6
        %v1045 = vsub.f32 %v798, 25.6
        %v1046 = vsub.f32 %v799, 25.6
        %v1047 = vsub.f32 %v800, 25.6
        %v1048 = vsub.f32 %v801, 25.6
        %v1049 = vsub.f32 %v802, 25.6
        %v1050 = vsub.f32 %v803, 25.6
        %v1051 = vsel %vm987, %v1019, %v772
        %v1052 = vsel %vm988, %v1020, %v773
        %v1053 = vsel %vm989, %v1021, %v774
        %v1054 = vsel %vm990, %v1022, %v775
        %v1055 = vsel %vm991, %v1023, %v776
        %v1056 = vsel %vm992, %v1024, %v777
        %v1057 = vsel %vm993, %v1025, %v778
        %v1058 = vsel %vm994, %v1026, %v779
        %v1059 = vsel %vm995, %v1027, %v780
        %v1060 = vsel %vm996, %v1028, %v781
        %v1061 = vsel %vm997, %v1029, %v782
        %v1062 = vsel %vm998, %v1030, %v783
        %v1063 = vsel %vm999, %v1031, %v784
        %v1064 = vsel %vm1000, %v1032, %v785
        %v1065 = vsel %vm1001, %v1033, %v786
        %v1066 = vsel %vm1002, %v1034, %v787
        %v1067 = vsel %vm1003, %v1035, %v788
        %v1068 = vsel %vm1004, %v1036, %v789
        %v1069 = vsel %vm1005, %v1037, %v790
        %v1070 = vsel %vm1006, %v1038, %v791
        %v1071 = vsel %vm1007, %v1039, %v792
        %v1072 = vsel %vm1008, %v1040, %v793
        %v1073 = vsel %vm1009, %v1041, %v794
        %v1074 = vsel %vm1010, %v1042, %v795
        %v1075 = vsel %vm1011, %v1043, %v796
        %v1076 = vsel %vm1012, %v1044, %v797
        %v1077 = vsel %vm1013, %v1045, %v798
        %v1078 = vsel %vm1014, %v1046, %v799
        %v1079 = vsel %vm1015, %v1047, %v800
        %v1080 = vsel %vm1016, %v1048, %v801
        %v1081 = vsel %vm1017, %v1049, %v802
        %v1082 = vsel %vm1018, %v1050, %v803
        %vm1083 = vcmp.lt.s32.totalorder %v809, 1000
        %vm1084 = vcmp.lt.s32.totalorder %v810, 1000
        %v1085 = vsel %vm1083, %v1051, -1e+30
        %v1086 = vsel %vm1084, %v1052, -1e+30
        %v1087 = vsel %vm1083, %v1053, -1e+30
        %v1088 = vsel %vm1084, %v1054, -1e+30
        %v1089 = vsel %vm1083, %v1055, -1e+30
        %v1090 = vsel %vm1084, %v1056, -1e+30
        %v1091 = vsel %vm1083, %v1057, -1e+30
        %v1092 = vsel %vm1084, %v1058, -1e+30
        %v1093 = vsel %vm1083, %v1059, -1e+30
        %v1094 = vsel %vm1084, %v1060, -1e+30
        %v1095 = vsel %vm1083, %v1061, -1e+30
        %v1096 = vsel %vm1084, %v1062, -1e+30
        %v1097 = vsel %vm1083, %v1063, -1e+30
        %v1098 = vsel %vm1084, %v1064, -1e+30
        %v1099 = vsel %vm1083, %v1065, -1e+30
        %v1100 = vsel %vm1084, %v1066, -1e+30
        %v1101 = vsel %vm1083, %v1067, -1e+30
        %v1102 = vsel %vm1084, %v1068, -1e+30
        %v1103 = vsel %vm1083, %v1069, -1e+30
        %v1104 = vsel %vm1084, %v1070, -1e+30
        %v1105 = vsel %vm1083, %v1071, -1e+30
        %v1106 = vsel %vm1084, %v1072, -1e+30
        %v1107 = vsel %vm1083, %v1073, -1e+30
        %v1108 = vsel %vm1084, %v1074, -1e+30
        %v1109 = vsel %vm1083, %v1075, -1e+30
        %v1110 = vsel %vm1084, %v1076, -1e+30
        %v1111 = vsel %vm1083, %v1077, -1e+30
        %v1112 = vsel %vm1084, %v1078, -1e+30
        %v1113 = vsel %vm1083, %v1079, -1e+30
        %v1114 = vsel %vm1084, %v1080, -1e+30
        %v1115 = vsel %vm1083, %v1081, -1e+30
        %v1116 = vsel %vm1084, %v1082, -1e+30
        %v1117 = vld [vmem:[#allocation5] sm:$0xff]
        %v1118 = vld [vmem:[#allocation5 + $0x8] sm:$0xff]
        %v1119 = vld [vmem:[#allocation5 + $0x10] sm:$0xff]
        %v1120 = vld [vmem:[#allocation5 + $0x18] sm:$0xff]
        %v1121 = vld [vmem:[#allocation5 + $0x20] sm:$0xff]
        %v1122 = vld [vmem:[#allocation5 + $0x28] sm:$0xff]
        %v1123 = vld [vmem:[#allocation5 + $0x30] sm:$0xff]
        %v1124 = vld [vmem:[#allocation5 + $0x38] sm:$0xff]
        %v1125 = vld [vmem:[#allocation5 + $0x40] sm:$0xff]
        %v1126 = vld [vmem:[#allocation5 + $0x48] sm:$0xff]
        %v1127 = vld [vmem:[#allocation5 + $0x50] sm:$0xff]
        %v1128 = vld [vmem:[#allocation5 + $0x58] sm:$0xff]
        %v1129 = vld [vmem:[#allocation5 + $0x60] sm:$0xff]
        %v1130 = vld [vmem:[#allocation5 + $0x68] sm:$0xff]
        %v1131 = vld [vmem:[#allocation5 + $0x70] sm:$0xff]
        %v1132 = vld [vmem:[#allocation5 + $0x78] sm:$0xff]
        %v1133 = vsel %vm987, %v1085, 0.0
        %v1134 = vsel %vm988, %v1086, 0.0
        %v1135 = vsel %vm989, %v1087, 0.0
        %v1136 = vsel %vm990, %v1088, 0.0
        %v1137 = vsel %vm991, %v1089, 0.0
        %v1138 = vsel %vm992, %v1090, 0.0
        %v1139 = vsel %vm993, %v1091, 0.0
        %v1140 = vsel %vm994, %v1092, 0.0
        %v1141 = vsel %vm995, %v1093, 0.0
        %v1142 = vsel %vm996, %v1094, 0.0
        %v1143 = vsel %vm997, %v1095, 0.0
        %v1144 = vsel %vm998, %v1096, 0.0
        %v1145 = vsel %vm999, %v1097, 0.0
        %v1146 = vsel %vm1000, %v1098, 0.0
        %v1147 = vsel %vm1001, %v1099, 0.0
        %v1148 = vsel %vm1002, %v1100, 0.0
        %v1149 = vsel %vm1003, %v1101, 0.0
        %v1150 = vsel %vm1004, %v1102, 0.0
        %v1151 = vsel %vm1005, %v1103, 0.0
        %v1152 = vsel %vm1006, %v1104, 0.0
        %v1153 = vsel %vm1007, %v1105, 0.0
        %v1154 = vsel %vm1008, %v1106, 0.0
        %v1155 = vsel %vm1009, %v1107, 0.0
        %v1156 = vsel %vm1010, %v1108, 0.0
        %v1157 = vsel %vm1011, %v1109, 0.0
        %v1158 = vsel %vm1012, %v1110, 0.0
        %v1159 = vsel %vm1013, %v1111, 0.0
        %v1160 = vsel %vm1014, %v1112, 0.0
        %v1161 = vsel %vm1015, %v1113, 0.0
        %v1162 = vsel %vm1016, %v1114, 0.0
        %v1163 = vsel %vm1017, %v1115, 0.0
        %v1164 = vsel %vm1018, %v1116, 0.0
        %v1165 = vadd.f32 %v1133, %v1134
        %1166 = vadd.xlane.f32.xlu0 %v1165
        %v1167 = vpop.xlane.xlu0 %1166
        %v1168 = vadd.f32 %v1135, %v1136
        %1169 = vadd.xlane.f32.xlu0 %v1168
        %v1170 = vpop.xlane.xlu0 %1169
        %v1171 = vadd.f32 %v1137, %v1138
        %1172 = vadd.xlane.f32.xlu0 %v1171
        %v1173 = vpop.xlane.xlu0 %1172
        %v1174 = vadd.f32 %v1139, %v1140
        %1175 = vadd.xlane.f32.xlu0 %v1174
        %v1176 = vpop.xlane.xlu0 %1175
        %v1177 = vadd.f32 %v1141, %v1142
        %1178 = vadd.xlane.f32.xlu0 %v1177
        %v1179 = vpop.xlane.xlu0 %1178
        %v1180 = vadd.f32 %v1143, %v1144
        %1181 = vadd.xlane.f32.xlu0 %v1180
        %v1182 = vpop.xlane.xlu0 %1181
        %v1183 = vadd.f32 %v1145, %v1146
        %1184 = vadd.xlane.f32.xlu0 %v1183
        %v1185 = vpop.xlane.xlu0 %1184
        %v1186 = vadd.f32 %v1147, %v1148
        %1187 = vadd.xlane.f32.xlu0 %v1186
        %v1188 = vpop.xlane.xlu0 %1187
        %v1189 = vadd.f32 %v1149, %v1150
        %1190 = vadd.xlane.f32.xlu0 %v1189
        %v1191 = vpop.xlane.xlu0 %1190
        %v1192 = vadd.f32 %v1151, %v1152
        %1193 = vadd.xlane.f32.xlu0 %v1192
        %v1194 = vpop.xlane.xlu0 %1193
        %v1195 = vadd.f32 %v1153, %v1154
        %1196 = vadd.xlane.f32.xlu0 %v1195
        %v1197 = vpop.xlane.xlu0 %1196
        %v1198 = vadd.f32 %v1155, %v1156
        %1199 = vadd.xlane.f32.xlu0 %v1198
        %v1200 = vpop.xlane.xlu0 %1199
        %v1201 = vadd.f32 %v1157, %v1158
        %1202 = vadd.xlane.f32.xlu0 %v1201
        %v1203 = vpop.xlane.xlu0 %1202
        %v1204 = vadd.f32 %v1159, %v1160
        %1205 = vadd.xlane.f32.xlu0 %v1204
        %v1206 = vpop.xlane.xlu0 %1205
        %v1207 = vadd.f32 %v1161, %v1162
        %1208 = vadd.xlane.f32.xlu0 %v1207
        %v1209 = vpop.xlane.xlu0 %1208
        %v1210 = vadd.f32 %v1163, %v1164
        %1211 = vadd.xlane.f32.xlu0 %v1210
        %v1212 = vpop.xlane.xlu0 %1211
        %v1213 = vadd.f32 %v1117, %v1167
        %v1214 = vadd.f32 %v1118, %v1170
        %v1215 = vadd.f32 %v1119, %v1173
        %v1216 = vadd.f32 %v1120, %v1176
        %v1217 = vadd.f32 %v1121, %v1179
        %v1218 = vadd.f32 %v1122, %v1182
        %v1219 = vadd.f32 %v1123, %v1185
        %v1220 = vadd.f32 %v1124, %v1188
        %v1221 = vadd.f32 %v1125, %v1191
        %v1222 = vadd.f32 %v1126, %v1194
        %v1223 = vadd.f32 %v1127, %v1197
        %v1224 = vadd.f32 %v1128, %v1200
        %v1225 = vadd.f32 %v1129, %v1203
        %v1226 = vadd.f32 %v1130, %v1206
        %v1227 = vadd.f32 %v1131, %v1209
        %v1228 = vadd.f32 %v1132, %v1212
        %vm1229 = vcmask 7168
        %1230 = vst.msk [vmem:[#allocation5] sm:$0xff] %vm1229, %v1213
        %1231 = vst.msk [vmem:[#allocation5 + $0x8] sm:$0xff] %vm1229, %v1214
        %1232 = vst.msk [vmem:[#allocation5 + $0x10] sm:$0xff] %vm1229, %v1215
        %1233 = vst.msk [vmem:[#allocation5 + $0x18] sm:$0xff] %vm1229, %v1216
        %1234 = vst.msk [vmem:[#allocation5 + $0x20] sm:$0xff] %vm1229, %v1217
        %1235 = vst.msk [vmem:[#allocation5 + $0x28] sm:$0xff] %vm1229, %v1218
        %1236 = vst.msk [vmem:[#allocation5 + $0x30] sm:$0xff] %vm1229, %v1219
        %1237 = vst.msk [vmem:[#allocation5 + $0x38] sm:$0xff] %vm1229, %v1220
        %1238 = vst.msk [vmem:[#allocation5 + $0x40] sm:$0xff] %vm1229, %v1221
        %1239 = vst.msk [vmem:[#allocation5 + $0x48] sm:$0xff] %vm1229, %v1222
        %1240 = vst.msk [vmem:[#allocation5 + $0x50] sm:$0xff] %vm1229, %v1223
        %1241 = vst.msk [vmem:[#allocation5 + $0x58] sm:$0xff] %vm1229, %v1224
        %1242 = vst.msk [vmem:[#allocation5 + $0x60] sm:$0xff] %vm1229, %v1225
        %1243 = vst.msk [vmem:[#allocation5 + $0x68] sm:$0xff] %vm1229, %v1226
        %1244 = vst.msk [vmem:[#allocation5 + $0x70] sm:$0xff] %vm1229, %v1227
        %1245 = vst.msk [vmem:[#allocation5 + $0x78] sm:$0xff] %vm1229, %v1228
        %v1246 = vld [vmem:[#allocation3] sm:$0xff]
        %v1247 = vld [vmem:[#allocation3 + $0x8] sm:$0xff]
        %v1248 = vld [vmem:[#allocation3 + $0x10] sm:$0xff]
        %v1249 = vld [vmem:[#allocation3 + $0x18] sm:$0xff]
        %v1250 = vld [vmem:[#allocation3 + $0x20] sm:$0xff]
        %v1251 = vld [vmem:[#allocation3 + $0x28] sm:$0xff]
        %v1252 = vld [vmem:[#allocation3 + $0x30] sm:$0xff]
        %v1253 = vld [vmem:[#allocation3 + $0x38] sm:$0xff]
        %v1254 = vld [vmem:[#allocation3 + $0x40] sm:$0xff]
        %v1255 = vld [vmem:[#allocation3 + $0x48] sm:$0xff]
        %v1256 = vld [vmem:[#allocation3 + $0x50] sm:$0xff]
        %v1257 = vld [vmem:[#allocation3 + $0x58] sm:$0xff]
        %v1258 = vld [vmem:[#allocation3 + $0x60] sm:$0xff]
        %v1259 = vld [vmem:[#allocation3 + $0x68] sm:$0xff]
        %v1260 = vld [vmem:[#allocation3 + $0x70] sm:$0xff]
        %v1261 = vld [vmem:[#allocation3 + $0x78] sm:$0xff]
        %v1262 = vmax.f32 %v1085, %v1086
        %1263 = vmax.xlane.f32.xlu0 %v1262
        %v1264 = vpop.xlane.xlu0 %1263
        %v1265 = vmax.f32 %v1087, %v1088
        %1266 = vmax.xlane.f32.xlu0 %v1265
        %v1267 = vpop.xlane.xlu0 %1266
        %v1268 = vmax.f32 %v1089, %v1090
        %1269 = vmax.xlane.f32.xlu0 %v1268
        %v1270 = vpop.xlane.xlu0 %1269
        %v1271 = vmax.f32 %v1091, %v1092
        %1272 = vmax.xlane.f32.xlu0 %v1271
        %v1273 = vpop.xlane.xlu0 %1272
        %v1274 = vmax.f32 %v1093, %v1094
        %1275 = vmax.xlane.f32.xlu0 %v1274
        %v1276 = vpop.xlane.xlu0 %1275
        %v1277 = vmax.f32 %v1095, %v1096
        %1278 = vmax.xlane.f32.xlu0 %v1277
        %v1279 = vpop.xlane.xlu0 %1278
        %v1280 = vmax.f32 %v1097, %v1098
        %1281 = vmax.xlane.f32.xlu0 %v1280
        %v1282 = vpop.xlane.xlu0 %1281
        %v1283 = vmax.f32 %v1099, %v1100
        %1284 = vmax.xlane.f32.xlu0 %v1283
        %v1285 = vpop.xlane.xlu0 %1284
        %v1286 = vmax.f32 %v1101, %v1102
        %1287 = vmax.xlane.f32.xlu0 %v1286
        %v1288 = vpop.xlane.xlu0 %1287
        %v1289 = vmax.f32 %v1103, %v1104
        %1290 = vmax.xlane.f32.xlu0 %v1289
        %v1291 = vpop.xlane.xlu0 %1290
        %v1292 = vmax.f32 %v1105, %v1106
        %1293 = vmax.xlane.f32.xlu0 %v1292
        %v1294 = vpop.xlane.xlu0 %1293
        %v1295 = vmax.f32 %v1107, %v1108
        %1296 = vmax.xlane.f32.xlu0 %v1295
        %v1297 = vpop.xlane.xlu0 %1296
        %v1298 = vmax.f32 %v1109, %v1110
        %1299 = vmax.xlane.f32.xlu0 %v1298
        %v1300 = vpop.xlane.xlu0 %1299
        %v1301 = vmax.f32 %v1111, %v1112
        %1302 = vmax.xlane.f32.xlu0 %v1301
        %v1303 = vpop.xlane.xlu0 %1302
        %v1304 = vmax.f32 %v1113, %v1114
        %1305 = vmax.xlane.f32.xlu0 %v1304
        %v1306 = vpop.xlane.xlu0 %1305
        %v1307 = vmax.f32 %v1115, %v1116
        %1308 = vmax.xlane.f32.xlu0 %v1307
        %v1309 = vpop.xlane.xlu0 %1308
        %v1310 = vmax.f32 %v1246, %v1264
        %v1311 = vmax.f32 %v1247, %v1267
        %v1312 = vmax.f32 %v1248, %v1270
        %v1313 = vmax.f32 %v1249, %v1273
        %v1314 = vmax.f32 %v1250, %v1276
        %v1315 = vmax.f32 %v1251, %v1279
        %v1316 = vmax.f32 %v1252, %v1282
        %v1317 = vmax.f32 %v1253, %v1285
        %v1318 = vmax.f32 %v1254, %v1288
        %v1319 = vmax.f32 %v1255, %v1291
        %v1320 = vmax.f32 %v1256, %v1294
        %v1321 = vmax.f32 %v1257, %v1297
        %v1322 = vmax.f32 %v1258, %v1300
        %v1323 = vmax.f32 %v1259, %v1303
        %v1324 = vmax.f32 %v1260, %v1306
        %v1325 = vmax.f32 %v1261, %v1309
        %v1326 = vsub.f32 %v1246, %v1310
        %v1327 = vsub.f32 %v1247, %v1311
        %v1328 = vsub.f32 %v1248, %v1312
        %v1329 = vsub.f32 %v1249, %v1313
        %v1330 = vsub.f32 %v1250, %v1314
        %v1331 = vsub.f32 %v1251, %v1315
        %v1332 = vsub.f32 %v1252, %v1316
        %v1333 = vsub.f32 %v1253, %v1317
        %v1334 = vsub.f32 %v1254, %v1318
        %v1335 = vsub.f32 %v1255, %v1319
        %v1336 = vsub.f32 %v1256, %v1320
        %v1337 = vsub.f32 %v1257, %v1321
        %v1338 = vsub.f32 %v1258, %v1322
        %v1339 = vsub.f32 %v1259, %v1323
        %v1340 = vsub.f32 %v1260, %v1324
        %v1341 = vsub.f32 %v1261, %v1325
        %v1342 = vmul.f32 %v1326, 1.442695
        %v1343 = vpow.pop %v1342
        %v1344 = vmul.f32 %v1327, 1.442695
        %v1345 = vpow.pop %v1344
        %v1346 = vmul.f32 %v1328, 1.442695
        %v1347 = vpow.pop %v1346
        %v1348 = vmul.f32 %v1329, 1.442695
        %v1349 = vpow.pop %v1348
        %v1350 = vmul.f32 %v1330, 1.442695
        %v1351 = vpow.pop %v1350
        %v1352 = vmul.f32 %v1331, 1.442695
        %v1353 = vpow.pop %v1352
        %v1354 = vmul.f32 %v1332, 1.442695
        %v1355 = vpow.pop %v1354
        %v1356 = vmul.f32 %v1333, 1.442695
        %v1357 = vpow.pop %v1356
        %v1358 = vmul.f32 %v1334, 1.442695
        %v1359 = vpow.pop %v1358
        %v1360 = vmul.f32 %v1335, 1.442695
        %v1361 = vpow.pop %v1360
        %v1362 = vmul.f32 %v1336, 1.442695
        %v1363 = vpow.pop %v1362
        %v1364 = vmul.f32 %v1337, 1.442695
        %v1365 = vpow.pop %v1364
        %v1366 = vmul.f32 %v1338, 1.442695
        %v1367 = vpow.pop %v1366
        %v1368 = vmul.f32 %v1339, 1.442695
        %v1369 = vpow.pop %v1368
        %v1370 = vmul.f32 %v1340, 1.442695
        %v1371 = vpow.pop %v1370
        %v1372 = vmul.f32 %v1341, 1.442695
        %v1373 = vpow.pop %v1372
        %v1374 = vld [vmem:[#allocation4] sm:$0xff]
        %v1375 = vld [vmem:[#allocation4 + $0x8] sm:$0xff]
        %v1376 = vld [vmem:[#allocation4 + $0x10] sm:$0xff]
        %v1377 = vld [vmem:[#allocation4 + $0x18] sm:$0xff]
        %v1378 = vld [vmem:[#allocation4 + $0x20] sm:$0xff]
        %v1379 = vld [vmem:[#allocation4 + $0x28] sm:$0xff]
        %v1380 = vld [vmem:[#allocation4 + $0x30] sm:$0xff]
        %v1381 = vld [vmem:[#allocation4 + $0x38] sm:$0xff]
        %v1382 = vld [vmem:[#allocation4 + $0x40] sm:$0xff]
        %v1383 = vld [vmem:[#allocation4 + $0x48] sm:$0xff]
        %v1384 = vld [vmem:[#allocation4 + $0x50] sm:$0xff]
        %v1385 = vld [vmem:[#allocation4 + $0x58] sm:$0xff]
        %v1386 = vld [vmem:[#allocation4 + $0x60] sm:$0xff]
        %v1387 = vld [vmem:[#allocation4 + $0x68] sm:$0xff]
        %v1388 = vld [vmem:[#allocation4 + $0x70] sm:$0xff]
        %v1389 = vld [vmem:[#allocation4 + $0x78] sm:$0xff]
        %v1390 = vmul.f32 %v1343, %v1374
        %v1391 = vmul.f32 %v1345, %v1375
        %v1392 = vmul.f32 %v1347, %v1376
        %v1393 = vmul.f32 %v1349, %v1377
        %v1394 = vmul.f32 %v1351, %v1378
        %v1395 = vmul.f32 %v1353, %v1379
        %v1396 = vmul.f32 %v1355, %v1380
        %v1397 = vmul.f32 %v1357, %v1381
        %v1398 = vmul.f32 %v1359, %v1382
        %v1399 = vmul.f32 %v1361, %v1383
        %v1400 = vmul.f32 %v1363, %v1384
        %v1401 = vmul.f32 %v1365, %v1385
        %v1402 = vmul.f32 %v1367, %v1386
        %v1403 = vmul.f32 %v1369, %v1387
        %v1404 = vmul.f32 %v1371, %v1388
        %v1405 = vmul.f32 %v1373, %v1389
        %1407 = vset.pattern.permute.xlu0 0
        %1408 = vperm.xlu0 %1407, %v1310
        %v1409 = vpop.permute.xlu0 %1408
        %1412 = vset.pattern.permute.xlu0 0
        %1413 = vperm.xlu0 %1412, %v1311
        %v1414 = vpop.permute.xlu0 %1413
        %1417 = vset.pattern.permute.xlu0 0
        %1418 = vperm.xlu0 %1417, %v1312
        %v1419 = vpop.permute.xlu0 %1418
        %1422 = vset.pattern.permute.xlu0 0
        %1423 = vperm.xlu0 %1422, %v1313
        %v1424 = vpop.permute.xlu0 %1423
        %1427 = vset.pattern.permute.xlu0 0
        %1428 = vperm.xlu0 %1427, %v1314
        %v1429 = vpop.permute.xlu0 %1428
        %1432 = vset.pattern.permute.xlu0 0
        %1433 = vperm.xlu0 %1432, %v1315
        %v1434 = vpop.permute.xlu0 %1433
        %1437 = vset.pattern.permute.xlu0 0
        %1438 = vperm.xlu0 %1437, %v1316
        %v1439 = vpop.permute.xlu0 %1438
        %1442 = vset.pattern.permute.xlu0 0
        %1443 = vperm.xlu0 %1442, %v1317
        %v1444 = vpop.permute.xlu0 %1443
        %1447 = vset.pattern.permute.xlu0 0
        %1448 = vperm.xlu0 %1447, %v1318
        %v1449 = vpop.permute.xlu0 %1448
        %1452 = vset.pattern.permute.xlu0 0
        %1453 = vperm.xlu0 %1452, %v1319
        %v1454 = vpop.permute.xlu0 %1453
        %1457 = vset.pattern.permute.xlu0 0
        %1458 = vperm.xlu0 %1457, %v1320
        %v1459 = vpop.permute.xlu0 %1458
        %1462 = vset.pattern.permute.xlu0 0
        %1463 = vperm.xlu0 %1462, %v1321
        %v1464 = vpop.permute.xlu0 %1463
        %1467 = vset.pattern.permute.xlu0 0
        %1468 = vperm.xlu0 %1467, %v1322
        %v1469 = vpop.permute.xlu0 %1468
        %1472 = vset.pattern.permute.xlu0 0
        %1473 = vperm.xlu0 %1472, %v1323
        %v1474 = vpop.permute.xlu0 %1473
        %1477 = vset.pattern.permute.xlu0 0
        %1478 = vperm.xlu0 %1477, %v1324
        %v1479 = vpop.permute.xlu0 %1478
        %1482 = vset.pattern.permute.xlu0 0
        %1483 = vperm.xlu0 %1482, %v1325
        %v1484 = vpop.permute.xlu0 %1483
        %v1486 = vsub.f32 %v1085, %v1409
        %v1487 = vsub.f32 %v1086, %v1409
        %v1488 = vsub.f32 %v1087, %v1414
        %v1489 = vsub.f32 %v1088, %v1414
        %v1490 = vsub.f32 %v1089, %v1419
        %v1491 = vsub.f32 %v1090, %v1419
        %v1492 = vsub.f32 %v1091, %v1424
        %v1493 = vsub.f32 %v1092, %v1424
        %v1494 = vsub.f32 %v1093, %v1429
        %v1495 = vsub.f32 %v1094, %v1429
        %v1496 = vsub.f32 %v1095, %v1434
        %v1497 = vsub.f32 %v1096, %v1434
        %v1498 = vsub.f32 %v1097, %v1439
        %v1499 = vsub.f32 %v1098, %v1439
        %v1500 = vsub.f32 %v1099, %v1444
        %v1501 = vsub.f32 %v1100, %v1444
        %v1502 = vsub.f32 %v1101, %v1449
        %v1503 = vsub.f32 %v1102, %v1449
        %v1504 = vsub.f32 %v1103, %v1454
        %v1505 = vsub.f32 %v1104, %v1454
        %v1506 = vsub.f32 %v1105, %v1459
        %v1507 = vsub.f32 %v1106, %v1459
        %v1508 = vsub.f32 %v1107, %v1464
        %v1509 = vsub.f32 %v1108, %v1464
        %v1510 = vsub.f32 %v1109, %v1469
        %v1511 = vsub.f32 %v1110, %v1469
        %v1512 = vsub.f32 %v1111, %v1474
        %v1513 = vsub.f32 %v1112, %v1474
        %v1514 = vsub.f32 %v1113, %v1479
        %v1515 = vsub.f32 %v1114, %v1479
        %v1516 = vsub.f32 %v1115, %v1484
        %v1517 = vsub.f32 %v1116, %v1484
        %v1518 = vmul.f32 %v1486, 1.442695
        %v1519 = vpow.pop %v1518
        %v1520 = vmul.f32 %v1487, 1.442695
        %v1521 = vpow.pop %v1520
        %v1522 = vmul.f32 %v1488, 1.442695
        %v1523 = vpow.pop %v1522
        %v1524 = vmul.f32 %v1489, 1.442695
        %v1525 = vpow.pop %v1524
        %v1526 = vmul.f32 %v1490, 1.442695
        %v1527 = vpow.pop %v1526
        %v1528 = vmul.f32 %v1491, 1.442695
        %v1529 = vpow.pop %v1528
        %v1530 = vmul.f32 %v1492, 1.442695
        %v1531 = vpow.pop %v1530
        %v1532 = vmul.f32 %v1493, 1.442695
        %v1533 = vpow.pop %v1532
        %v1534 = vmul.f32 %v1494, 1.442695
        %v1535 = vpow.pop %v1534
        %v1536 = vmul.f32 %v1495, 1.442695
        %v1537 = vpow.pop %v1536
        %v1538 = vmul.f32 %v1496, 1.442695
        %v1539 = vpow.pop %v1538
        %v1540 = vmul.f32 %v1497, 1.442695
        %v1541 = vpow.pop %v1540
        %v1542 = vmul.f32 %v1498, 1.442695
        %v1543 = vpow.pop %v1542
        %v1544 = vmul.f32 %v1499, 1.442695
        %v1545 = vpow.pop %v1544
        %v1546 = vmul.f32 %v1500, 1.442695
        %v1547 = vpow.pop %v1546
        %v1548 = vmul.f32 %v1501, 1.442695
        %v1549 = vpow.pop %v1548
        %v1550 = vmul.f32 %v1502, 1.442695
        %v1551 = vpow.pop %v1550
        %v1552 = vmul.f32 %v1503, 1.442695
        %v1553 = vpow.pop %v1552
        %v1554 = vmul.f32 %v1504, 1.442695
        %v1555 = vpow.pop %v1554
        %v1556 = vmul.f32 %v1505, 1.442695
        %v1557 = vpow.pop %v1556
        %v1558 = vmul.f32 %v1506, 1.442695
        %v1559 = vpow.pop %v1558
        %v1560 = vmul.f32 %v1507, 1.442695
        %v1561 = vpow.pop %v1560
        %v1562 = vmul.f32 %v1508, 1.442695
        %v1563 = vpow.pop %v1562
        %v1564 = vmul.f32 %v1509, 1.442695
        %v1565 = vpow.pop %v1564
        %v1566 = vmul.f32 %v1510, 1.442695
        %v1567 = vpow.pop %v1566
        %v1568 = vmul.f32 %v1511, 1.442695
        %v1569 = vpow.pop %v1568
        %v1570 = vmul.f32 %v1512, 1.442695
        %v1571 = vpow.pop %v1570
        %v1572 = vmul.f32 %v1513, 1.442695
        %v1573 = vpow.pop %v1572
        %v1574 = vmul.f32 %v1514, 1.442695
        %v1575 = vpow.pop %v1574
        %v1576 = vmul.f32 %v1515, 1.442695
        %v1577 = vpow.pop %v1576
        %v1578 = vmul.f32 %v1516, 1.442695
        %v1579 = vpow.pop %v1578
        %v1580 = vmul.f32 %v1517, 1.442695
        %v1581 = vpow.pop %v1580
        %v1582 = vadd.f32 %v1519, %v1521
        %1583 = vadd.xlane.f32.xlu0 %v1582
        %v1584 = vpop.xlane.xlu0 %1583
        %v1585 = vadd.f32 %v1523, %v1525
        %1586 = vadd.xlane.f32.xlu0 %v1585
        %v1587 = vpop.xlane.xlu0 %1586
        %v1588 = vadd.f32 %v1527, %v1529
        %1589 = vadd.xlane.f32.xlu0 %v1588
        %v1590 = vpop.xlane.xlu0 %1589
        %v1591 = vadd.f32 %v1531, %v1533
        %1592 = vadd.xlane.f32.xlu0 %v1591
        %v1593 = vpop.xlane.xlu0 %1592
        %v1594 = vadd.f32 %v1535, %v1537
        %1595 = vadd.xlane.f32.xlu0 %v1594
        %v1596 = vpop.xlane.xlu0 %1595
        %v1597 = vadd.f32 %v1539, %v1541
        %1598 = vadd.xlane.f32.xlu0 %v1597
        %v1599 = vpop.xlane.xlu0 %1598
        %v1600 = vadd.f32 %v1543, %v1545
        %1601 = vadd.xlane.f32.xlu0 %v1600
        %v1602 = vpop.xlane.xlu0 %1601
        %v1603 = vadd.f32 %v1547, %v1549
        %1604 = vadd.xlane.f32.xlu0 %v1603
        %v1605 = vpop.xlane.xlu0 %1604
        %v1606 = vadd.f32 %v1551, %v1553
        %1607 = vadd.xlane.f32.xlu0 %v1606
        %v1608 = vpop.xlane.xlu0 %1607
        %v1609 = vadd.f32 %v1555, %v1557
        %1610 = vadd.xlane.f32.xlu0 %v1609
        %v1611 = vpop.xlane.xlu0 %1610
        %v1612 = vadd.f32 %v1559, %v1561
        %1613 = vadd.xlane.f32.xlu0 %v1612
        %v1614 = vpop.xlane.xlu0 %1613
        %v1615 = vadd.f32 %v1563, %v1565
        %1616 = vadd.xlane.f32.xlu0 %v1615
        %v1617 = vpop.xlane.xlu0 %1616
        %v1618 = vadd.f32 %v1567, %v1569
        %1619 = vadd.xlane.f32.xlu0 %v1618
        %v1620 = vpop.xlane.xlu0 %1619
        %v1621 = vadd.f32 %v1571, %v1573
        %1622 = vadd.xlane.f32.xlu0 %v1621
        %v1623 = vpop.xlane.xlu0 %1622
        %v1624 = vadd.f32 %v1575, %v1577
        %1625 = vadd.xlane.f32.xlu0 %v1624
        %v1626 = vpop.xlane.xlu0 %1625
        %v1627 = vadd.f32 %v1579, %v1581
        %1628 = vadd.xlane.f32.xlu0 %v1627
        %v1629 = vpop.xlane.xlu0 %1628
        %v1630 = vadd.f32 %v1390, %v1584
        %v1631 = vadd.f32 %v1391, %v1587
        %v1632 = vadd.f32 %v1392, %v1590
        %v1633 = vadd.f32 %v1393, %v1593
        %v1634 = vadd.f32 %v1394, %v1596
        %v1635 = vadd.f32 %v1395, %v1599
        %v1636 = vadd.f32 %v1396, %v1602
        %v1637 = vadd.f32 %v1397, %v1605
        %v1638 = vadd.f32 %v1398, %v1608
        %v1639 = vadd.f32 %v1399, %v1611
        %v1640 = vadd.f32 %v1400, %v1614
        %v1641 = vadd.f32 %v1401, %v1617
        %v1642 = vadd.f32 %v1402, %v1620
        %v1643 = vadd.f32 %v1403, %v1623
        %v1644 = vadd.f32 %v1404, %v1626
        %v1645 = vadd.f32 %v1405, %v1629
        %1646 = vst.msk [vmem:[#allocation4] sm:$0xff] %vm1229, %v1630
        %1647 = vst.msk [vmem:[#allocation4 + $0x8] sm:$0xff] %vm1229, %v1631
        %1648 = vst.msk [vmem:[#allocation4 + $0x10] sm:$0xff] %vm1229, %v1632
        %1649 = vst.msk [vmem:[#allocation4 + $0x18] sm:$0xff] %vm1229, %v1633
        %1650 = vst.msk [vmem:[#allocation4 + $0x20] sm:$0xff] %vm1229, %v1634
        %1651 = vst.msk [vmem:[#allocation4 + $0x28] sm:$0xff] %vm1229, %v1635
        %1652 = vst.msk [vmem:[#allocation4 + $0x30] sm:$0xff] %vm1229, %v1636
        %1653 = vst.msk [vmem:[#allocation4 + $0x38] sm:$0xff] %vm1229, %v1637
        %1654 = vst.msk [vmem:[#allocation4 + $0x40] sm:$0xff] %vm1229, %v1638
        %1655 = vst.msk [vmem:[#allocation4 + $0x48] sm:$0xff] %vm1229, %v1639
        %1656 = vst.msk [vmem:[#allocation4 + $0x50] sm:$0xff] %vm1229, %v1640
        %1657 = vst.msk [vmem:[#allocation4 + $0x58] sm:$0xff] %vm1229, %v1641
        %1658 = vst.msk [vmem:[#allocation4 + $0x60] sm:$0xff] %vm1229, %v1642
        %1659 = vst.msk [vmem:[#allocation4 + $0x68] sm:$0xff] %vm1229, %v1643
        %1660 = vst.msk [vmem:[#allocation4 + $0x70] sm:$0xff] %vm1229, %v1644
        %1661 = vst.msk [vmem:[#allocation4 + $0x78] sm:$0xff] %vm1229, %v1645
        %1662 = vst.msk [vmem:[#allocation3] sm:$0xff] %vm1229, %v1310
        %1663 = vst.msk [vmem:[#allocation3 + $0x8] sm:$0xff] %vm1229, %v1311
        %1664 = vst.msk [vmem:[#allocation3 + $0x10] sm:$0xff] %vm1229, %v1312
        %1665 = vst.msk [vmem:[#allocation3 + $0x18] sm:$0xff] %vm1229, %v1313
        %1666 = vst.msk [vmem:[#allocation3 + $0x20] sm:$0xff] %vm1229, %v1314
        %1667 = vst.msk [vmem:[#allocation3 + $0x28] sm:$0xff] %vm1229, %v1315
        %1668 = vst.msk [vmem:[#allocation3 + $0x30] sm:$0xff] %vm1229, %v1316
        %1669 = vst.msk [vmem:[#allocation3 + $0x38] sm:$0xff] %vm1229, %v1317
        %1670 = vst.msk [vmem:[#allocation3 + $0x40] sm:$0xff] %vm1229, %v1318
        %1671 = vst.msk [vmem:[#allocation3 + $0x48] sm:$0xff] %vm1229, %v1319
        %1672 = vst.msk [vmem:[#allocation3 + $0x50] sm:$0xff] %vm1229, %v1320
        %1673 = vst.msk [vmem:[#allocation3 + $0x58] sm:$0xff] %vm1229, %v1321
        %1674 = vst.msk [vmem:[#allocation3 + $0x60] sm:$0xff] %vm1229, %v1322
        %1675 = vst.msk [vmem:[#allocation3 + $0x68] sm:$0xff] %vm1229, %v1323
        %1676 = vst.msk [vmem:[#allocation3 + $0x70] sm:$0xff] %vm1229, %v1324
        %1677 = vst.msk [vmem:[#allocation3 + $0x78] sm:$0xff] %vm1229, %v1325
        %p1678 = scmp.eq.s32.totalorder %s22, 3
        // Predicated region
        $region41: #{tpu_custom_call.1} parent=31 // pred_check
          %p1679 = pneg %p1678
        $region42: #{tpu_custom_call.1} parent=31 // pred_check_branch
          %1681 = sbr.rel (%p1679) target = $region44
        $region43: #{tpu_custom_call.1} parent=31 // pred_region
          %v1682 = vld [vmem:[#allocation3] sm:$0xff]
          %v1683 = vld [vmem:[#allocation3 + $0x8] sm:$0xff]
          %v1684 = vld [vmem:[#allocation3 + $0x10] sm:$0xff]
          %v1685 = vld [vmem:[#allocation3 + $0x18] sm:$0xff]
          %v1686 = vld [vmem:[#allocation3 + $0x20] sm:$0xff]
          %v1687 = vld [vmem:[#allocation3 + $0x28] sm:$0xff]
          %v1688 = vld [vmem:[#allocation3 + $0x30] sm:$0xff]
          %v1689 = vld [vmem:[#allocation3 + $0x38] sm:$0xff]
          %v1690 = vld [vmem:[#allocation3 + $0x40] sm:$0xff]
          %v1691 = vld [vmem:[#allocation3 + $0x48] sm:$0xff]
          %v1692 = vld [vmem:[#allocation3 + $0x50] sm:$0xff]
          %v1693 = vld [vmem:[#allocation3 + $0x58] sm:$0xff]
          %v1694 = vld [vmem:[#allocation3 + $0x60] sm:$0xff]
          %v1695 = vld [vmem:[#allocation3 + $0x68] sm:$0xff]
          %v1696 = vld [vmem:[#allocation3 + $0x70] sm:$0xff]
          %v1697 = vld [vmem:[#allocation3 + $0x78] sm:$0xff]
          %v1698 = vld [vmem:[#allocation4] sm:$0xff]
          %v1699 = vld [vmem:[#allocation4 + $0x8] sm:$0xff]
          %v1700 = vld [vmem:[#allocation4 + $0x10] sm:$0xff]
          %v1701 = vld [vmem:[#allocation4 + $0x18] sm:$0xff]
          %v1702 = vld [vmem:[#allocation4 + $0x20] sm:$0xff]
          %v1703 = vld [vmem:[#allocation4 + $0x28] sm:$0xff]
          %v1704 = vld [vmem:[#allocation4 + $0x30] sm:$0xff]
          %v1705 = vld [vmem:[#allocation4 + $0x38] sm:$0xff]
          %v1706 = vld [vmem:[#allocation4 + $0x40] sm:$0xff]
          %v1707 = vld [vmem:[#allocation4 + $0x48] sm:$0xff]
          %v1708 = vld [vmem:[#allocation4 + $0x50] sm:$0xff]
          %v1709 = vld [vmem:[#allocation4 + $0x58] sm:$0xff]
          %v1710 = vld [vmem:[#allocation4 + $0x60] sm:$0xff]
          %v1711 = vld [vmem:[#allocation4 + $0x68] sm:$0xff]
          %v1712 = vld [vmem:[#allocation4 + $0x70] sm:$0xff]
          %v1713 = vld [vmem:[#allocation4 + $0x78] sm:$0xff]
          %v1714 = vlog2.pop %v1698
          %v1715 = vmul.f32 %v1714, 0.6931472
          %v1716 = vlog2.pop %v1699
          %v1717 = vmul.f32 %v1716, 0.6931472
          %v1718 = vlog2.pop %v1700
          %v1719 = vmul.f32 %v1718, 0.6931472
          %v1720 = vlog2.pop %v1701
          %v1721 = vmul.f32 %v1720, 0.6931472
          %v1722 = vlog2.pop %v1702
          %v1723 = vmul.f32 %v1722, 0.6931472
          %v1724 = vlog2.pop %v1703
          %v1725 = vmul.f32 %v1724, 0.6931472
          %v1726 = vlog2.pop %v1704
          %v1727 = vmul.f32 %v1726, 0.6931472
          %v1728 = vlog2.pop %v1705
          %v1729 = vmul.f32 %v1728, 0.6931472
          %v1730 = vlog2.pop %v1706
          %v1731 = vmul.f32 %v1730, 0.6931472
          %v1732 = vlog2.pop %v1707
          %v1733 = vmul.f32 %v1732, 0.6931472
          %v1734 = vlog2.pop %v1708
          %v1735 = vmul.f32 %v1734, 0.6931472
          %v1736 = vlog2.pop %v1709
          %v1737 = vmul.f32 %v1736, 0.6931472
          %v1738 = vlog2.pop %v1710
          %v1739 = vmul.f32 %v1738, 0.6931472
          %v1740 = vlog2.pop %v1711
          %v1741 = vmul.f32 %v1740, 0.6931472
          %v1742 = vlog2.pop %v1712
          %v1743 = vmul.f32 %v1742, 0.6931472
          %v1744 = vlog2.pop %v1713
          %v1745 = vmul.f32 %v1744, 0.6931472
          %v1746 = vadd.f32 %v1682, %v1715
          %v1747 = vadd.f32 %v1683, %v1717
          %v1748 = vadd.f32 %v1684, %v1719
          %v1749 = vadd.f32 %v1685, %v1721
          %v1750 = vadd.f32 %v1686, %v1723
          %v1751 = vadd.f32 %v1687, %v1725
          %v1752 = vadd.f32 %v1688, %v1727
          %v1753 = vadd.f32 %v1689, %v1729
          %v1754 = vadd.f32 %v1690, %v1731
          %v1755 = vadd.f32 %v1691, %v1733
          %v1756 = vadd.f32 %v1692, %v1735
          %v1757 = vadd.f32 %v1693, %v1737
          %v1758 = vadd.f32 %v1694, %v1739
          %v1759 = vadd.f32 %v1695, %v1741
          %v1760 = vadd.f32 %v1696, %v1743
          %v1761 = vadd.f32 %v1697, %v1745
          %v1762 = vld [vmem:[#allocation5] sm:$0xff]
          %v1763 = vld [vmem:[#allocation5 + $0x8] sm:$0xff]
          %v1764 = vld [vmem:[#allocation5 + $0x10] sm:$0xff]
          %v1765 = vld [vmem:[#allocation5 + $0x18] sm:$0xff]
          %v1766 = vld [vmem:[#allocation5 + $0x20] sm:$0xff]
          %v1767 = vld [vmem:[#allocation5 + $0x28] sm:$0xff]
          %v1768 = vld [vmem:[#allocation5 + $0x30] sm:$0xff]
          %v1769 = vld [vmem:[#allocation5 + $0x38] sm:$0xff]
          %v1770 = vld [vmem:[#allocation5 + $0x40] sm:$0xff]
          %v1771 = vld [vmem:[#allocation5 + $0x48] sm:$0xff]
          %v1772 = vld [vmem:[#allocation5 + $0x50] sm:$0xff]
          %v1773 = vld [vmem:[#allocation5 + $0x58] sm:$0xff]
          %v1774 = vld [vmem:[#allocation5 + $0x60] sm:$0xff]
          %v1775 = vld [vmem:[#allocation5 + $0x68] sm:$0xff]
          %v1776 = vld [vmem:[#allocation5 + $0x70] sm:$0xff]
          %v1777 = vld [vmem:[#allocation5 + $0x78] sm:$0xff]
          %v1778 = vsub.f32 %v1746, %v1762
          %v1779 = vsub.f32 %v1747, %v1763
          %v1780 = vsub.f32 %v1748, %v1764
          %v1781 = vsub.f32 %v1749, %v1765
          %v1782 = vsub.f32 %v1750, %v1766
          %v1783 = vsub.f32 %v1751, %v1767
          %v1784 = vsub.f32 %v1752, %v1768
          %v1785 = vsub.f32 %v1753, %v1769
          %v1786 = vsub.f32 %v1754, %v1770
          %v1787 = vsub.f32 %v1755, %v1771
          %v1788 = vsub.f32 %v1756, %v1772
          %v1789 = vsub.f32 %v1757, %v1773
          %v1790 = vsub.f32 %v1758, %v1774
          %v1791 = vsub.f32 %v1759, %v1775
          %v1792 = vsub.f32 %v1760, %v1776
          %v1793 = vsub.f32 %v1761, %v1777
          %v1794 = vsel %vm891, %v1778, 0.0
          %v1795 = vsel %vm892, %v1779, 0.0
          %v1796 = vsel %vm893, %v1780, 0.0
          %v1797 = vsel %vm894, %v1781, 0.0
          %v1798 = vsel %vm895, %v1782, 0.0
          %v1799 = vsel %vm896, %v1783, 0.0
          %v1800 = vsel %vm897, %v1784, 0.0
          %v1801 = vsel %vm898, %v1785, 0.0
          %v1802 = vsel %vm899, %v1786, 0.0
          %v1803 = vsel %vm900, %v1787, 0.0
          %v1804 = vsel %vm901, %v1788, 0.0
          %v1805 = vsel %vm902, %v1789, 0.0
          %v1806 = vsel %vm903, %v1790, 0.0
          %v1807 = vsel %vm904, %v1791, 0.0
          %v1808 = vsel %vm905, %v1792, 0.0
          %v1809 = vsel %vm906, %v1793, 0.0
          %1810 = vst.msk [vmem:[%s247] sm:$0xff] %vm1229, %v1794
          %1811 = vst.msk [vmem:[%s247 + $0x8] sm:$0xff] %vm1229, %v1795
          %1812 = vst.msk [vmem:[%s247 + $0x10] sm:$0xff] %vm1229, %v1796
          %1813 = vst.msk [vmem:[%s247 + $0x18] sm:$0xff] %vm1229, %v1797
          %1814 = vst.msk [vmem:[%s247 + $0x20] sm:$0xff] %vm1229, %v1798
          %1815 = vst.msk [vmem:[%s247 + $0x28] sm:$0xff] %vm1229, %v1799
          %1816 = vst.msk [vmem:[%s247 + $0x30] sm:$0xff] %vm1229, %v1800
          %1817 = vst.msk [vmem:[%s247 + $0x38] sm:$0xff] %vm1229, %v1801
          %1818 = vst.msk [vmem:[%s247 + $0x40] sm:$0xff] %vm1229, %v1802
          %1819 = vst.msk [vmem:[%s247 + $0x48] sm:$0xff] %vm1229, %v1803
          %1820 = vst.msk [vmem:[%s247 + $0x50] sm:$0xff] %vm1229, %v1804
          %1821 = vst.msk [vmem:[%s247 + $0x58] sm:$0xff] %vm1229, %v1805
          %1822 = vst.msk [vmem:[%s247 + $0x60] sm:$0xff] %vm1229, %v1806
          %1823 = vst.msk [vmem:[%s247 + $0x68] sm:$0xff] %vm1229, %v1807
          %1824 = vst.msk [vmem:[%s247 + $0x70] sm:$0xff] %vm1229, %v1808
          %1825 = vst.msk [vmem:[%s247 + $0x78] sm:$0xff] %vm1229, %v1809
        $region44: #{tpu_custom_call.1} parent=31 // pred_fallthru
          _
        %s1826 = smul.u32 16, %s21
        %p1827 = scmp.lt.s32.totalorder %s1826, 15
        %s1828 = scalar_select %p1827, %s1826, 15
        %s1829 = smul.addr %s1828, 8
        %s1830 = scalar_lea.vmem %s3, %s1829
        // Predicated region
        $region45: #{tpu_custom_call.1} parent=31 // pred_check
          %p1831 = pneg %p125
        $region46: #{tpu_custom_call.1} parent=31 // pred_check_branch
          %1833 = sbr.rel (%p1831) target = $region48
        $region47: #{tpu_custom_call.1} parent=31 // pred_region
          %s1834 = smul.u32 16, %s21
        $region48: #{tpu_custom_call.1} parent=31 // pred_fallthru
          _
        // Predicated region
        $region49: #{tpu_custom_call.1} parent=31 // pred_check
          %p1835 = pneg %p125
        $region50: #{tpu_custom_call.1} parent=31 // pred_check_branch
          %1837 = sbr.rel (%p1835) target = $region52
        $region51: #{tpu_custom_call.1} parent=31 // pred_region
          %s1838 = smul.u32 16, %s21
          %p1839 = scmp.lt.s32.totalorder %s1838, 15
          %s1840 = scalar_select %p1839, %s1838, 15
          %s1841 = smul.addr %s1840, 8
          %s1842 = scalar_lea.vmem %s3, %s1841
        $region52: #{tpu_custom_call.1} parent=31 // pred_fallthru
          _
      $region32: #{tpu_custom_call.1} parent=5 // pred_fallthru
        _
      %p1843 = scmp.le.s32.totalorder 2, %s12
      // Predicated region
      $region53: #{tpu_custom_call.1} parent=5 // pred_check
        %p1844 = pneg %p1843
      $region54: #{tpu_custom_call.1} parent=5 // pred_check_branch
        %1846 = sbr.rel (%p1844) target = $region56
      $region55: #{tpu_custom_call.1} parent=5 // pred_region
        %s1847 = ssub.s32 %s12, 2
      $region56: #{tpu_custom_call.1} parent=5 // pred_fallthru
        _
    $region6: #{tpu_custom_call.1} parent=1 // loop_footer
      %s16 = sadd.s32 1, %s12
    $region7: #{tpu_custom_call.1} parent=1 // loop_footer_branch
      %11 = sbr.rel target = $region3
    $region8: #{tpu_custom_call.1} parent=1 // loop_exit
      _
    %1848 = vsyncpa [#allocation7], 1
    %s1849 = scalar_lea.sflag [#allocation7], 1
    %1850 = vsyncpa %s1849, 1

</llo_original>
